<compile_context>
chip_gen: v6e
topology: v6e:2x2x1
jax: 0.10.0
libtpu: 0.0.40
codegen_flags: <defaults>
</compile_context>

<pallas_src>
import functools
import math
import string

import jax
import jax.numpy as jnp
from jax import lax
from jax.experimental import pallas as pl
from jax.experimental.pallas import tpu as pltpu

ALL_LETTERS = string.ascii_letters + " ,.;'"
OUT_PAD = 128   # lane-dense padded logits width
SUBLANE = 8     # f32 sublane granularity


def _round_up(x, m):
    return (x + m - 1) // m * m


def lstm_seq_kernel(x_gates_ref, h0_ref, c0_ref, w_hh_ref, w_lin_ref, b_lin_ref,
                    logp_ref, hn_ref, cn_ref, h_all_ref, *, seq_len):
    """Whole-sequence LSTM recurrence + deferred linear head + log-softmax.

    x_gates_ref: (T_pad, 4H) f32   precomputed x_t @ W_ih^T + b_ih + b_hh
    w_hh_ref:    (H, 4H)     bf16  recurrent weight (VMEM resident)
    w_lin_ref:   (H, OUT_PAD) bf16 classifier weight (lane-padded, resident)
    b_lin_ref:   (1, OUT_PAD) f32  classifier bias (-1e30 in pad lanes, f32!)
    logp_ref:    (T_pad, OUT_PAD) f32 per-step log-probs (one writeback)
    hn_ref/cn_ref: (1, H) f32      final hidden / cell state
    h_all_ref:   (T_pad, H) f32    scratch holding every h_t for the head
    """
    H = h0_ref.shape[-1]

    # Zero the pad rows of the h scratch so the deferred head stays finite.
    h_all_ref[...] = jnp.zeros_like(h_all_ref)

    def _sigmoid(x):
        # EUP exp + approx EUP reciprocal: keeps the divide off the VPU path.
        return pl.reciprocal(1.0 + jnp.exp(-x), approx=True)

    def step(t, carry):
        h, c = carry                                           # (1, H) f32
        gates = (x_gates_ref[pl.ds(t, 1), :]
                 + jnp.dot(h.astype(w_hh_ref.dtype), w_hh_ref[...],
                           preferred_element_type=jnp.float32))  # (1, 4H)
        # PyTorch gate order: input, forget, cell(g), output
        i_g = _sigmoid(gates[:, 0 * H:1 * H])
        f_g = _sigmoid(gates[:, 1 * H:2 * H])
        g_g = jnp.tanh(gates[:, 2 * H:3 * H])
        o_g = _sigmoid(gates[:, 3 * H:4 * H])
        c_new = f_g * c + i_g * g_g
        h_new = o_g * jnp.tanh(c_new)
        h_all_ref[pl.ds(t, 1), :] = h_new
        return h_new, c_new

    h_fin, c_fin = lax.fori_loop(0, seq_len, step,
                                 (h0_ref[...], c0_ref[...]), unroll=True)
    hn_ref[...] = h_fin
    cn_ref[...] = c_fin

    # Deferred classifier head: ONE (T_pad, H) x (H, OUT_PAD) matmul + a
    # batched log-softmax over all timesteps (pad lanes pinned to ~-1e30).
    logits = (jnp.dot(h_all_ref[...].astype(w_lin_ref.dtype), w_lin_ref[...],
                      preferred_element_type=jnp.float32)
              + b_lin_ref[...])                                # (T_pad, OUT_PAD)
    m = jnp.max(logits, axis=-1, keepdims=True)
    lse = m + jnp.log(jnp.sum(jnp.exp(logits - m), axis=-1, keepdims=True))
    logp_ref[...] = logits - lse


def lstm_forward(letter_indices, h0, c0, params, output_size):
    """letter_indices: (T,) int32 letter ids; h0, c0: (1, 1, H).
    Returns (log_probs: (T,1,output_size), hn: (1,1,H), cn: (1,1,H))."""
    w_ih_b, w_hh, w_lin, b_lin = params
    T = int(letter_indices.shape[0])
    H = w_hh.shape[0]
    G = w_hh.shape[1]
    OP = w_lin.shape[1]
    T_pad = _round_up(max(T, 1), SUBLANE)

    # One-hot input GEMM + fused gate bias == a row gather of (W_ih^T + b),
    # done once in the wrapper so the in-kernel recurrence has no
    # data-dependent reads on its serial path.
    x_gates = jnp.zeros((T_pad, G), jnp.float32)
    x_gates = x_gates.at[:T].set(w_ih_b[letter_indices])

    h0_2d = h0.reshape(1, H).astype(jnp.float32)
    c0_2d = c0.reshape(1, H).astype(jnp.float32)

    flops = T * 2 * H * G + 2 * T_pad * H * OP
    transcendentals = T * 6 * H + T_pad * OP
    bytes_accessed = (x_gates.size * 4 + w_hh.size * 2 + w_lin.size * 2
                      + b_lin.size * 4 + T_pad * OP * 4 + 4 * H * 4)

    kernel = functools.partial(lstm_seq_kernel, seq_len=T)

    logp_pad, hn, cn = pl.pallas_call(
        kernel,
        grid=(1,),
        in_specs=[
            pl.BlockSpec((T_pad, G), lambda i: (0, 0)),   # x_gates (resident)
            pl.BlockSpec((1, H), lambda i: (0, 0)),       # h0
            pl.BlockSpec((1, H), lambda i: (0, 0)),       # c0
            pl.BlockSpec((H, G), lambda i: (0, 0)),       # W_hh  (bf16, resident)
            pl.BlockSpec((H, OP), lambda i: (0, 0)),      # W_lin (bf16, resident)
            pl.BlockSpec((1, OP), lambda i: (0, 0)),      # b_lin (f32, pad=-1e30)
        ],
        out_specs=(
            pl.BlockSpec((T_pad, OP), lambda i: (0, 0)),  # log-probs (1 writeback)
            pl.BlockSpec((1, H), lambda i: (0, 0)),       # h_T
            pl.BlockSpec((1, H), lambda i: (0, 0)),       # c_T
        ),
        out_shape=(jax.ShapeDtypeStruct((T_pad, OP), jnp.float32),
                   jax.ShapeDtypeStruct((1, H), jnp.float32),
                   jax.ShapeDtypeStruct((1, H), jnp.float32)),
        scratch_shapes=[pltpu.VMEM((T_pad, H), jnp.float32)],   # h_t history
        compiler_params=pltpu.CompilerParams(
            dimension_semantics=("arbitrary",)),
        cost_estimate=pl.CostEstimate(flops=flops,
                                      transcendentals=transcendentals,
                                      bytes_accessed=bytes_accessed),
    )(x_gates, h0_2d, c0_2d, w_hh, w_lin, b_lin)

    log_probs = logp_pad[:T, :output_size].reshape(T, 1, output_size)
    return log_probs, hn.reshape(1, 1, H), cn.reshape(1, 1, H)


def init_params(key, input_size, hidden_size, output_size):
    """PyTorch-style U(-1/sqrt(H), 1/sqrt(H)) init.
    Weights stored transposed (in, out); the fused gate bias is folded into
    W_ih; matmul weights cast to bf16; linear head padded to a lane-dense
    OUT_PAD with -1e30 bias padding (bias stays f32)."""
    G = 4 * hidden_size
    ks = jax.random.split(key, 6)
    bound = 1.0 / math.sqrt(hidden_size)
    w_ih = jax.random.uniform(ks[0], (input_size, G), jnp.float32, -bound, bound)
    w_hh = jax.random.uniform(ks[1], (hidden_size, G), jnp.float32, -bound, bound)
    b_ih = jax.random.uniform(ks[2], (1, G), jnp.float32, -bound, bound)
    b_hh = jax.random.uniform(ks[3], (1, G), jnp.float32, -bound, bound)
    w_lin = jax.random.uniform(ks[4], (hidden_size, output_size), jnp.float32,
                               -bound, bound)
    b_lin = jax.random.uniform(ks[5], (1, output_size), jnp.float32,
                               -bound, bound)

    # Fold b_ih + b_hh into the (one-hot-gathered) input-weight rows.
    w_ih_b = w_ih + (b_ih + b_hh)

    w_lin_pad = jnp.zeros((hidden_size, OUT_PAD), jnp.float32)
    w_lin_pad = w_lin_pad.at[:, :output_size].set(w_lin)
    b_lin_pad = jnp.full((1, OUT_PAD), -1e30, jnp.float32)   # must stay f32
    b_lin_pad = b_lin_pad.at[:, :output_size].set(b_lin)

    return (w_ih_b,                        # f32, gathered in the wrapper
            w_hh.astype(jnp.bfloat16),     # bf16 MXU weight (resident)
            w_lin_pad.astype(jnp.bfloat16),
            b_lin_pad)


def line_to_indices(line):
    return jnp.array([ALL_LETTERS.index(ch) for ch in line], dtype=jnp.int32)


def lstm_ref(letter_indices, h0, c0, params, output_size):
    """Pure-JAX reference mirroring the kernel math (same weights/dtypes)."""
    w_ih_b, w_hh, w_lin, b_lin = params
    H = w_hh.shape[0]
    h = h0.reshape(1, H).astype(jnp.float32)
    c = c0.reshape(1, H).astype(jnp.float32)
    outs = []
    for t in range(int(letter_indices.shape[0])):
        x_g = w_ih_b[letter_indices[t]][None, :]
        gates = x_g + jnp.dot(h.astype(w_hh.dtype), w_hh,
                              preferred_element_type=jnp.float32)
        i_g = jax.nn.sigmoid(gates[:, 0 * H:1 * H])
        f_g = jax.nn.sigmoid(gates[:, 1 * H:2 * H])
        g_g = jnp.tanh(gates[:, 2 * H:3 * H])
        o_g = jax.nn.sigmoid(gates[:, 3 * H:4 * H])
        c = f_g * c + i_g * g_g
        h = o_g * jnp.tanh(c)
        logits = (jnp.dot(h.astype(w_lin.dtype), w_lin,
                          preferred_element_type=jnp.float32) + b_lin)
        m = jnp.max(logits, axis=-1, keepdims=True)
        lse = m + jnp.log(jnp.sum(jnp.exp(logits - m), axis=-1, keepdims=True))
        outs.append((logits - lse)[:, :output_size])
    return jnp.stack(outs), h, c


if __name__ == "__main__":
    hidden_size = 128
    input_size = len(ALL_LETTERS)          # 57 one-hot letter features
    output_size = 18                       # number of name categories

    key = jax.random.PRNGKey(0)
    params = init_params(key, input_size, hidden_size, output_size)

    # A whole name processed in one kernel launch (the original module loops
    # one letter per forward call; seq-length T here, T=1 is a special case).
    name = "Baker"
    letter_indices = line_to_indices(name)
    h0 = jnp.zeros((1, 1, hidden_size), jnp.float32)   # initHiddenAndC()
    c0 = jnp.zeros((1, 1, hidden_size), jnp.float32)

    log_probs, hn, cn = lstm_forward(letter_indices, h0, c0, params, output_size)
    jax.block_until_ready((log_probs, hn, cn))

    # Shape checks
    assert log_probs.shape == (len(name), 1, output_size)
    assert hn.shape == (1, 1, hidden_size)
    assert cn.shape == (1, 1, hidden_size)

    # log_softmax sanity: probabilities sum to 1 at every timestep
    probs_sum = jnp.sum(jnp.exp(log_probs), axis=-1)
    assert bool(jnp.all(jnp.abs(probs_sum - 1.0) < 1e-3))

    # Numerics vs a pure-JAX reference of the same LSTM
    ref_lp, ref_h, ref_c = lstm_ref(letter_indices, h0, c0, params, output_size)
    assert bool(jnp.allclose(log_probs, ref_lp, atol=1e-2, rtol=1e-2))
    assert bool(jnp.allclose(hn.reshape(1, -1), ref_h, atol=1e-2, rtol=1e-2))
    assert bool(jnp.allclose(cn.reshape(1, -1), ref_c, atol=1e-2, rtol=1e-2))

    # TODO(synk): for throughput (many names), batch B sequences per call so the
    # recurrent matmul fills the MXU M dimension (and shard batch across v7x TCs).

    print("KERNEL_OK")
</pallas_src>

<mosaic_0001>
module attributes {stable_mosaic.version = 11 : i64} {
  func.func @lstm_seq_kernel(%arg0: i32, %arg1: memref<8x512xf32, #tpu.memory_space<vmem>>, %arg2: memref<1x128xf32, #tpu.memory_space<vmem>>, %arg3: memref<1x128xf32, #tpu.memory_space<vmem>>, %arg4: memref<128x512xbf16, #tpu.memory_space<vmem>>, %arg5: memref<128x128xbf16, #tpu.memory_space<vmem>>, %arg6: memref<1x128xf32, #tpu.memory_space<vmem>>, %arg7: memref<8x128xf32, #tpu.memory_space<vmem>>, %arg8: memref<1x128xf32, #tpu.memory_space<vmem>>, %arg9: memref<1x128xf32, #tpu.memory_space<vmem>>, %arg10: memref<8x128xf32, #tpu.memory_space<vmem>>) attributes {dimension_semantics = [#tpu.dimension_semantics<arbitrary>], iteration_bounds = array<i64: 1>, scalar_prefetch = 0 : i64, scratch_operands = 1 : i64, tpu.core_type = #tpu.core_type<tc>, window_params = [{pipeline_mode = #tpu.pipeline_mode<synchronous>, transform_indices = @transform_0, window_bounds = array<i64: 8, 512>}, {pipeline_mode = #tpu.pipeline_mode<synchronous>, transform_indices = @transform_1, window_bounds = array<i64: 1, 128>}, {pipeline_mode = #tpu.pipeline_mode<synchronous>, transform_indices = @transform_2, window_bounds = array<i64: 1, 128>}, {pipeline_mode = #tpu.pipeline_mode<synchronous>, transform_indices = @transform_3, window_bounds = array<i64: 128, 512>}, {pipeline_mode = #tpu.pipeline_mode<synchronous>, transform_indices = @transform_4, window_bounds = array<i64: 128, 128>}, {pipeline_mode = #tpu.pipeline_mode<synchronous>, transform_indices = @transform_5, window_bounds = array<i64: 1, 128>}, {pipeline_mode = #tpu.pipeline_mode<synchronous>, transform_indices = @transform_6, window_bounds = array<i64: 8, 128>}, {pipeline_mode = #tpu.pipeline_mode<synchronous>, transform_indices = @transform_7, window_bounds = array<i64: 1, 128>}, {pipeline_mode = #tpu.pipeline_mode<synchronous>, transform_indices = @transform_8, window_bounds = array<i64: 1, 128>}]} {
    %cst = arith.constant 0.000000e+00 : f32
    %0 = vector.broadcast %cst : f32 to vector<8x128xf32>
    %c0 = arith.constant 0 : index
    %c0_0 = arith.constant 0 : index
    %1 = vector.load %arg10[%c0, %c0_0] : memref<8x128xf32, #tpu.memory_space<vmem>>, vector<8x128xf32>
    tpu.vector_store %arg10[%c0, %c0_0], %0 {strides = array<i32>} : memref<8x128xf32, #tpu.memory_space<vmem>>, vector<8x128xf32>,
    %c0_1 = arith.constant 0 : index
    %c0_2 = arith.constant 0 : index
    %2 = vector.load %arg2[%c0_1, %c0_2] : memref<1x128xf32, #tpu.memory_space<vmem>>, vector<1x128xf32>
    %c0_3 = arith.constant 0 : index
    %c0_4 = arith.constant 0 : index
    %3 = vector.load %arg3[%c0_3, %c0_4] : memref<1x128xf32, #tpu.memory_space<vmem>>, vector<1x128xf32>
    %c0_i32 = arith.constant 0 : i32
    %4 = arith.index_cast %c0_i32 : i32 to index
    %c0_5 = arith.constant 0 : index
    %5 = vector.load %arg1[%4, %c0_5] : memref<8x512xf32, #tpu.memory_space<vmem>>, vector<1x512xf32>
    %6 = arith.truncf %2 : vector<1x128xf32> to vector<1x128xbf16>
    %c0_6 = arith.constant 0 : index
    %c0_7 = arith.constant 0 : index
    %7 = vector.load %arg4[%c0_6, %c0_7] : memref<128x512xbf16, #tpu.memory_space<vmem>>, vector<128x512xbf16>
    %cst_8 = arith.constant dense<0.000000e+00> : vector<1x512xf32>
    %8 = tpu.matmul %6, %7, %cst_8 {dimension_numbers = #tpu.dot_dimension_numbers<[1], [0], [0], [1], [0, 0, 1, 1], [], []>} : vector<1x128xbf16>, vector<128x512xbf16>, vector<1x512xf32> -> vector<1x512xf32>
    %9 = arith.addf %5, %8 : vector<1x512xf32>
    %10 = vector.extract_strided_slice %9 {offsets = [0, 0], sizes = [1, 128], strides = [1, 1]} : vector<1x512xf32> to vector<1x128xf32>
    %cst_9 = arith.constant 0.000000e+00 : f32
    %11 = vector.broadcast %cst_9 : f32 to vector<1x128xf32>
    %12 = arith.subf %11, %10 : vector<1x128xf32>
    %13 = math.exp %12 : vector<1x128xf32>
    %cst_10 = arith.constant 1.000000e+00 : f32
    %14 = vector.broadcast %cst_10 : f32 to vector<1x128xf32>
    %15 = arith.addf %14, %13 : vector<1x128xf32>
    %16 = tpu.reciprocal %15 {approx = true} : vector<1x128xf32> -> vector<1x128xf32>
    %17 = vector.extract_strided_slice %9 {offsets = [0, 128], sizes = [1, 128], strides = [1, 1]} : vector<1x512xf32> to vector<1x128xf32>
    %cst_11 = arith.constant 0.000000e+00 : f32
    %18 = vector.broadcast %cst_11 : f32 to vector<1x128xf32>
    %19 = arith.subf %18, %17 : vector<1x128xf32>
    %20 = math.exp %19 : vector<1x128xf32>
    %cst_12 = arith.constant 1.000000e+00 : f32
    %21 = vector.broadcast %cst_12 : f32 to vector<1x128xf32>
    %22 = arith.addf %21, %20 : vector<1x128xf32>
    %23 = tpu.reciprocal %22 {approx = true} : vector<1x128xf32> -> vector<1x128xf32>
    %24 = vector.extract_strided_slice %9 {offsets = [0, 256], sizes = [1, 128], strides = [1, 1]} : vector<1x512xf32> to vector<1x128xf32>
    %25 = math.tanh %24 : vector<1x128xf32>
    %26 = vector.extract_strided_slice %9 {offsets = [0, 384], sizes = [1, 128], strides = [1, 1]} : vector<1x512xf32> to vector<1x128xf32>
    %cst_13 = arith.constant 0.000000e+00 : f32
    %27 = vector.broadcast %cst_13 : f32 to vector<1x128xf32>
    %28 = arith.subf %27, %26 : vector<1x128xf32>
    %29 = math.exp %28 : vector<1x128xf32>
    %cst_14 = arith.constant 1.000000e+00 : f32
    %30 = vector.broadcast %cst_14 : f32 to vector<1x128xf32>
    %31 = arith.addf %30, %29 : vector<1x128xf32>
    %32 = tpu.reciprocal %31 {approx = true} : vector<1x128xf32> -> vector<1x128xf32>
    %33 = arith.mulf %23, %3 : vector<1x128xf32>
    %34 = arith.mulf %16, %25 : vector<1x128xf32>
    %35 = arith.addf %33, %34 : vector<1x128xf32>
    %36 = math.tanh %35 : vector<1x128xf32>
    %37 = arith.mulf %32, %36 : vector<1x128xf32>
    %38 = arith.index_cast %c0_i32 : i32 to index
    %c0_15 = arith.constant 0 : index
    %39 = vector.load %arg10[%38, %c0_15] : memref<8x128xf32, #tpu.memory_space<vmem>>, vector<1x128xf32>
    tpu.vector_store %arg10[%38, %c0_15], %37 {strides = array<i32>} : memref<8x128xf32, #tpu.memory_space<vmem>>, vector<1x128xf32>,
    %c1_i32 = arith.constant 1 : i32
    %40 = arith.index_cast %c1_i32 : i32 to index
    %c0_16 = arith.constant 0 : index
    %41 = vector.load %arg1[%40, %c0_16] : memref<8x512xf32, #tpu.memory_space<vmem>>, vector<1x512xf32>
    %42 = arith.truncf %37 : vector<1x128xf32> to vector<1x128xbf16>
    %c0_17 = arith.constant 0 : index
    %c0_18 = arith.constant 0 : index
    %43 = vector.load %arg4[%c0_17, %c0_18] : memref<128x512xbf16, #tpu.memory_space<vmem>>, vector<128x512xbf16>
    %cst_19 = arith.constant dense<0.000000e+00> : vector<1x512xf32>
    %44 = tpu.matmul %42, %43, %cst_19 {dimension_numbers = #tpu.dot_dimension_numbers<[1], [0], [0], [1], [0, 0, 1, 1], [], []>} : vector<1x128xbf16>, vector<128x512xbf16>, vector<1x512xf32> -> vector<1x512xf32>
    %45 = arith.addf %41, %44 : vector<1x512xf32>
    %46 = vector.extract_strided_slice %45 {offsets = [0, 0], sizes = [1, 128], strides = [1, 1]} : vector<1x512xf32> to vector<1x128xf32>
    %cst_20 = arith.constant 0.000000e+00 : f32
    %47 = vector.broadcast %cst_20 : f32 to vector<1x128xf32>
    %48 = arith.subf %47, %46 : vector<1x128xf32>
    %49 = math.exp %48 : vector<1x128xf32>
    %cst_21 = arith.constant 1.000000e+00 : f32
    %50 = vector.broadcast %cst_21 : f32 to vector<1x128xf32>
    %51 = arith.addf %50, %49 : vector<1x128xf32>
    %52 = tpu.reciprocal %51 {approx = true} : vector<1x128xf32> -> vector<1x128xf32>
    %53 = vector.extract_strided_slice %45 {offsets = [0, 128], sizes = [1, 128], strides = [1, 1]} : vector<1x512xf32> to vector<1x128xf32>
    %cst_22 = arith.constant 0.000000e+00 : f32
    %54 = vector.broadcast %cst_22 : f32 to vector<1x128xf32>
    %55 = arith.subf %54, %53 : vector<1x128xf32>
    %56 = math.exp %55 : vector<1x128xf32>
    %cst_23 = arith.constant 1.000000e+00 : f32
    %57 = vector.broadcast %cst_23 : f32 to vector<1x128xf32>
    %58 = arith.addf %57, %56 : vector<1x128xf32>
    %59 = tpu.reciprocal %58 {approx = true} : vector<1x128xf32> -> vector<1x128xf32>
    %60 = vector.extract_strided_slice %45 {offsets = [0, 256], sizes = [1, 128], strides = [1, 1]} : vector<1x512xf32> to vector<1x128xf32>
    %61 = math.tanh %60 : vector<1x128xf32>
    %62 = vector.extract_strided_slice %45 {offsets = [0, 384], sizes = [1, 128], strides = [1, 1]} : vector<1x512xf32> to vector<1x128xf32>
    %cst_24 = arith.constant 0.000000e+00 : f32
    %63 = vector.broadcast %cst_24 : f32 to vector<1x128xf32>
    %64 = arith.subf %63, %62 : vector<1x128xf32>
    %65 = math.exp %64 : vector<1x128xf32>
    %cst_25 = arith.constant 1.000000e+00 : f32
    %66 = vector.broadcast %cst_25 : f32 to vector<1x128xf32>
    %67 = arith.addf %66, %65 : vector<1x128xf32>
    %68 = tpu.reciprocal %67 {approx = true} : vector<1x128xf32> -> vector<1x128xf32>
    %69 = arith.mulf %59, %35 : vector<1x128xf32>
    %70 = arith.mulf %52, %61 : vector<1x128xf32>
    %71 = arith.addf %69, %70 : vector<1x128xf32>
    %72 = math.tanh %71 : vector<1x128xf32>
    %73 = arith.mulf %68, %72 : vector<1x128xf32>
    %74 = arith.index_cast %c1_i32 : i32 to index
    %c0_26 = arith.constant 0 : index
    %75 = vector.load %arg10[%74, %c0_26] : memref<8x128xf32, #tpu.memory_space<vmem>>, vector<1x128xf32>
    tpu.vector_store %arg10[%74, %c0_26], %73 {strides = array<i32>} : memref<8x128xf32, #tpu.memory_space<vmem>>, vector<1x128xf32>,
    %c2_i32 = arith.constant 2 : i32
    %76 = arith.index_cast %c2_i32 : i32 to index
    %c0_27 = arith.constant 0 : index
    %77 = vector.load %arg1[%76, %c0_27] : memref<8x512xf32, #tpu.memory_space<vmem>>, vector<1x512xf32>
    %78 = arith.truncf %73 : vector<1x128xf32> to vector<1x128xbf16>
    %c0_28 = arith.constant 0 : index
    %c0_29 = arith.constant 0 : index
    %79 = vector.load %arg4[%c0_28, %c0_29] : memref<128x512xbf16, #tpu.memory_space<vmem>>, vector<128x512xbf16>
    %cst_30 = arith.constant dense<0.000000e+00> : vector<1x512xf32>
    %80 = tpu.matmul %78, %79, %cst_30 {dimension_numbers = #tpu.dot_dimension_numbers<[1], [0], [0], [1], [0, 0, 1, 1], [], []>} : vector<1x128xbf16>, vector<128x512xbf16>, vector<1x512xf32> -> vector<1x512xf32>
    %81 = arith.addf %77, %80 : vector<1x512xf32>
    %82 = vector.extract_strided_slice %81 {offsets = [0, 0], sizes = [1, 128], strides = [1, 1]} : vector<1x512xf32> to vector<1x128xf32>
    %cst_31 = arith.constant 0.000000e+00 : f32
    %83 = vector.broadcast %cst_31 : f32 to vector<1x128xf32>
    %84 = arith.subf %83, %82 : vector<1x128xf32>
    %85 = math.exp %84 : vector<1x128xf32>
    %cst_32 = arith.constant 1.000000e+00 : f32
    %86 = vector.broadcast %cst_32 : f32 to vector<1x128xf32>
    %87 = arith.addf %86, %85 : vector<1x128xf32>
    %88 = tpu.reciprocal %87 {approx = true} : vector<1x128xf32> -> vector<1x128xf32>
    %89 = vector.extract_strided_slice %81 {offsets = [0, 128], sizes = [1, 128], strides = [1, 1]} : vector<1x512xf32> to vector<1x128xf32>
    %cst_33 = arith.constant 0.000000e+00 : f32
    %90 = vector.broadcast %cst_33 : f32 to vector<1x128xf32>
    %91 = arith.subf %90, %89 : vector<1x128xf32>
    %92 = math.exp %91 : vector<1x128xf32>
    %cst_34 = arith.constant 1.000000e+00 : f32
    %93 = vector.broadcast %cst_34 : f32 to vector<1x128xf32>
    %94 = arith.addf %93, %92 : vector<1x128xf32>
    %95 = tpu.reciprocal %94 {approx = true} : vector<1x128xf32> -> vector<1x128xf32>
    %96 = vector.extract_strided_slice %81 {offsets = [0, 256], sizes = [1, 128], strides = [1, 1]} : vector<1x512xf32> to vector<1x128xf32>
    %97 = math.tanh %96 : vector<1x128xf32>
    %98 = vector.extract_strided_slice %81 {offsets = [0, 384], sizes = [1, 128], strides = [1, 1]} : vector<1x512xf32> to vector<1x128xf32>
    %cst_35 = arith.constant 0.000000e+00 : f32
    %99 = vector.broadcast %cst_35 : f32 to vector<1x128xf32>
    %100 = arith.subf %99, %98 : vector<1x128xf32>
    %101 = math.exp %100 : vector<1x128xf32>
    %cst_36 = arith.constant 1.000000e+00 : f32
    %102 = vector.broadcast %cst_36 : f32 to vector<1x128xf32>
    %103 = arith.addf %102, %101 : vector<1x128xf32>
    %104 = tpu.reciprocal %103 {approx = true} : vector<1x128xf32> -> vector<1x128xf32>
    %105 = arith.mulf %95, %71 : vector<1x128xf32>
    %106 = arith.mulf %88, %97 : vector<1x128xf32>
    %107 = arith.addf %105, %106 : vector<1x128xf32>
    %108 = math.tanh %107 : vector<1x128xf32>
    %109 = arith.mulf %104, %108 : vector<1x128xf32>
    %110 = arith.index_cast %c2_i32 : i32 to index
    %c0_37 = arith.constant 0 : index
    %111 = vector.load %arg10[%110, %c0_37] : memref<8x128xf32, #tpu.memory_space<vmem>>, vector<1x128xf32>
    tpu.vector_store %arg10[%110, %c0_37], %109 {strides = array<i32>} : memref<8x128xf32, #tpu.memory_space<vmem>>, vector<1x128xf32>,
    %c3_i32 = arith.constant 3 : i32
    %112 = arith.index_cast %c3_i32 : i32 to index
    %c0_38 = arith.constant 0 : index
    %113 = vector.load %arg1[%112, %c0_38] : memref<8x512xf32, #tpu.memory_space<vmem>>, vector<1x512xf32>
    %114 = arith.truncf %109 : vector<1x128xf32> to vector<1x128xbf16>
    %c0_39 = arith.constant 0 : index
    %c0_40 = arith.constant 0 : index
    %115 = vector.load %arg4[%c0_39, %c0_40] : memref<128x512xbf16, #tpu.memory_space<vmem>>, vector<128x512xbf16>
    %cst_41 = arith.constant dense<0.000000e+00> : vector<1x512xf32>
    %116 = tpu.matmul %114, %115, %cst_41 {dimension_numbers = #tpu.dot_dimension_numbers<[1], [0], [0], [1], [0, 0, 1, 1], [], []>} : vector<1x128xbf16>, vector<128x512xbf16>, vector<1x512xf32> -> vector<1x512xf32>
    %117 = arith.addf %113, %116 : vector<1x512xf32>
    %118 = vector.extract_strided_slice %117 {offsets = [0, 0], sizes = [1, 128], strides = [1, 1]} : vector<1x512xf32> to vector<1x128xf32>
    %cst_42 = arith.constant 0.000000e+00 : f32
    %119 = vector.broadcast %cst_42 : f32 to vector<1x128xf32>
    %120 = arith.subf %119, %118 : vector<1x128xf32>
    %121 = math.exp %120 : vector<1x128xf32>
    %cst_43 = arith.constant 1.000000e+00 : f32
    %122 = vector.broadcast %cst_43 : f32 to vector<1x128xf32>
    %123 = arith.addf %122, %121 : vector<1x128xf32>
    %124 = tpu.reciprocal %123 {approx = true} : vector<1x128xf32> -> vector<1x128xf32>
    %125 = vector.extract_strided_slice %117 {offsets = [0, 128], sizes = [1, 128], strides = [1, 1]} : vector<1x512xf32> to vector<1x128xf32>
    %cst_44 = arith.constant 0.000000e+00 : f32
    %126 = vector.broadcast %cst_44 : f32 to vector<1x128xf32>
    %127 = arith.subf %126, %125 : vector<1x128xf32>
    %128 = math.exp %127 : vector<1x128xf32>
    %cst_45 = arith.constant 1.000000e+00 : f32
    %129 = vector.broadcast %cst_45 : f32 to vector<1x128xf32>
    %130 = arith.addf %129, %128 : vector<1x128xf32>
    %131 = tpu.reciprocal %130 {approx = true} : vector<1x128xf32> -> vector<1x128xf32>
    %132 = vector.extract_strided_slice %117 {offsets = [0, 256], sizes = [1, 128], strides = [1, 1]} : vector<1x512xf32> to vector<1x128xf32>
    %133 = math.tanh %132 : vector<1x128xf32>
    %134 = vector.extract_strided_slice %117 {offsets = [0, 384], sizes = [1, 128], strides = [1, 1]} : vector<1x512xf32> to vector<1x128xf32>
    %cst_46 = arith.constant 0.000000e+00 : f32
    %135 = vector.broadcast %cst_46 : f32 to vector<1x128xf32>
    %136 = arith.subf %135, %134 : vector<1x128xf32>
    %137 = math.exp %136 : vector<1x128xf32>
    %cst_47 = arith.constant 1.000000e+00 : f32
    %138 = vector.broadcast %cst_47 : f32 to vector<1x128xf32>
    %139 = arith.addf %138, %137 : vector<1x128xf32>
    %140 = tpu.reciprocal %139 {approx = true} : vector<1x128xf32> -> vector<1x128xf32>
    %141 = arith.mulf %131, %107 : vector<1x128xf32>
    %142 = arith.mulf %124, %133 : vector<1x128xf32>
    %143 = arith.addf %141, %142 : vector<1x128xf32>
    %144 = math.tanh %143 : vector<1x128xf32>
    %145 = arith.mulf %140, %144 : vector<1x128xf32>
    %146 = arith.index_cast %c3_i32 : i32 to index
    %c0_48 = arith.constant 0 : index
    %147 = vector.load %arg10[%146, %c0_48] : memref<8x128xf32, #tpu.memory_space<vmem>>, vector<1x128xf32>
    tpu.vector_store %arg10[%146, %c0_48], %145 {strides = array<i32>} : memref<8x128xf32, #tpu.memory_space<vmem>>, vector<1x128xf32>,
    %c4_i32 = arith.constant 4 : i32
    %148 = arith.index_cast %c4_i32 : i32 to index
    %c0_49 = arith.constant 0 : index
    %149 = vector.load %arg1[%148, %c0_49] : memref<8x512xf32, #tpu.memory_space<vmem>>, vector<1x512xf32>
    %150 = arith.truncf %145 : vector<1x128xf32> to vector<1x128xbf16>
    %c0_50 = arith.constant 0 : index
    %c0_51 = arith.constant 0 : index
    %151 = vector.load %arg4[%c0_50, %c0_51] : memref<128x512xbf16, #tpu.memory_space<vmem>>, vector<128x512xbf16>
    %cst_52 = arith.constant dense<0.000000e+00> : vector<1x512xf32>
    %152 = tpu.matmul %150, %151, %cst_52 {dimension_numbers = #tpu.dot_dimension_numbers<[1], [0], [0], [1], [0, 0, 1, 1], [], []>} : vector<1x128xbf16>, vector<128x512xbf16>, vector<1x512xf32> -> vector<1x512xf32>
    %153 = arith.addf %149, %152 : vector<1x512xf32>
    %154 = vector.extract_strided_slice %153 {offsets = [0, 0], sizes = [1, 128], strides = [1, 1]} : vector<1x512xf32> to vector<1x128xf32>
    %cst_53 = arith.constant 0.000000e+00 : f32
    %155 = vector.broadcast %cst_53 : f32 to vector<1x128xf32>
    %156 = arith.subf %155, %154 : vector<1x128xf32>
    %157 = math.exp %156 : vector<1x128xf32>
    %cst_54 = arith.constant 1.000000e+00 : f32
    %158 = vector.broadcast %cst_54 : f32 to vector<1x128xf32>
    %159 = arith.addf %158, %157 : vector<1x128xf32>
    %160 = tpu.reciprocal %159 {approx = true} : vector<1x128xf32> -> vector<1x128xf32>
    %161 = vector.extract_strided_slice %153 {offsets = [0, 128], sizes = [1, 128], strides = [1, 1]} : vector<1x512xf32> to vector<1x128xf32>
    %cst_55 = arith.constant 0.000000e+00 : f32
    %162 = vector.broadcast %cst_55 : f32 to vector<1x128xf32>
    %163 = arith.subf %162, %161 : vector<1x128xf32>
    %164 = math.exp %163 : vector<1x128xf32>
    %cst_56 = arith.constant 1.000000e+00 : f32
    %165 = vector.broadcast %cst_56 : f32 to vector<1x128xf32>
    %166 = arith.addf %165, %164 : vector<1x128xf32>
    %167 = tpu.reciprocal %166 {approx = true} : vector<1x128xf32> -> vector<1x128xf32>
    %168 = vector.extract_strided_slice %153 {offsets = [0, 256], sizes = [1, 128], strides = [1, 1]} : vector<1x512xf32> to vector<1x128xf32>
    %169 = math.tanh %168 : vector<1x128xf32>
    %170 = vector.extract_strided_slice %153 {offsets = [0, 384], sizes = [1, 128], strides = [1, 1]} : vector<1x512xf32> to vector<1x128xf32>
    %cst_57 = arith.constant 0.000000e+00 : f32
    %171 = vector.broadcast %cst_57 : f32 to vector<1x128xf32>
    %172 = arith.subf %171, %170 : vector<1x128xf32>
    %173 = math.exp %172 : vector<1x128xf32>
    %cst_58 = arith.constant 1.000000e+00 : f32
    %174 = vector.broadcast %cst_58 : f32 to vector<1x128xf32>
    %175 = arith.addf %174, %173 : vector<1x128xf32>
    %176 = tpu.reciprocal %175 {approx = true} : vector<1x128xf32> -> vector<1x128xf32>
    %177 = arith.mulf %167, %143 : vector<1x128xf32>
    %178 = arith.mulf %160, %169 : vector<1x128xf32>
    %179 = arith.addf %177, %178 : vector<1x128xf32>
    %180 = math.tanh %179 : vector<1x128xf32>
    %181 = arith.mulf %176, %180 : vector<1x128xf32>
    %182 = arith.index_cast %c4_i32 : i32 to index
    %c0_59 = arith.constant 0 : index
    %183 = vector.load %arg10[%182, %c0_59] : memref<8x128xf32, #tpu.memory_space<vmem>>, vector<1x128xf32>
    tpu.vector_store %arg10[%182, %c0_59], %181 {strides = array<i32>} : memref<8x128xf32, #tpu.memory_space<vmem>>, vector<1x128xf32>,
    %c5_i32 = arith.constant 5 : i32
    %c0_60 = arith.constant 0 : index
    %c0_61 = arith.constant 0 : index
    %184 = vector.load %arg8[%c0_60, %c0_61] : memref<1x128xf32, #tpu.memory_space<vmem>>, vector<1x128xf32>
    tpu.vector_store %arg8[%c0_60, %c0_61], %181 {strides = array<i32>} : memref<1x128xf32, #tpu.memory_space<vmem>>, vector<1x128xf32>,
    %c0_62 = arith.constant 0 : index
    %c0_63 = arith.constant 0 : index
    %185 = vector.load %arg9[%c0_62, %c0_63] : memref<1x128xf32, #tpu.memory_space<vmem>>, vector<1x128xf32>
    tpu.vector_store %arg9[%c0_62, %c0_63], %179 {strides = array<i32>} : memref<1x128xf32, #tpu.memory_space<vmem>>, vector<1x128xf32>,
    %c0_64 = arith.constant 0 : index
    %c0_65 = arith.constant 0 : index
    %186 = vector.load %arg10[%c0_64, %c0_65] : memref<8x128xf32, #tpu.memory_space<vmem>>, vector<8x128xf32>
    %187 = arith.truncf %186 : vector<8x128xf32> to vector<8x128xbf16>
    %c0_66 = arith.constant 0 : index
    %c0_67 = arith.constant 0 : index
    %188 = vector.load %arg5[%c0_66, %c0_67] : memref<128x128xbf16, #tpu.memory_space<vmem>>, vector<128x128xbf16>
    %cst_68 = arith.constant dense<0.000000e+00> : vector<8x128xf32>
    %189 = tpu.matmul %187, %188, %cst_68 {dimension_numbers = #tpu.dot_dimension_numbers<[1], [0], [0], [1], [0, 0, 1, 1], [], []>} : vector<8x128xbf16>, vector<128x128xbf16>, vector<8x128xf32> -> vector<8x128xf32>
    %c0_69 = arith.constant 0 : index
    %c0_70 = arith.constant 0 : index
    %190 = vector.load %arg6[%c0_69, %c0_70] : memref<1x128xf32, #tpu.memory_space<vmem>>, vector<1x128xf32>
    %191 = vector.broadcast %190 : vector<1x128xf32> to vector<8x128xf32>
    %192 = arith.addf %189, %191 : vector<8x128xf32>
    %cst_71 = arith.constant dense<0xFF800000> : vector<8xf32>
    %193 = vector.multi_reduction <maximumf>, %192, %cst_71 [1] : vector<8x128xf32> to vector<8xf32>
    %194 = vector.shape_cast %193 : vector<8xf32> to vector<8x1xf32>
    %195 = vector.broadcast %194 : vector<8x1xf32> to vector<8x128xf32>
    %196 = arith.subf %192, %195 : vector<8x128xf32>
    %197 = math.exp %196 : vector<8x128xf32>
    %cst_72 = arith.constant dense<0.000000e+00> : vector<8xf32>
    %198 = vector.multi_reduction <add>, %197, %cst_72 [1] : vector<8x128xf32> to vector<8xf32>
    %199 = vector.shape_cast %198 : vector<8xf32> to vector<8x1xf32>
    %200 = math.log %199 : vector<8x1xf32>
    %201 = arith.addf %194, %200 : vector<8x1xf32>
    %202 = vector.broadcast %201 : vector<8x1xf32> to vector<8x128xf32>
    %203 = arith.subf %192, %202 : vector<8x128xf32>
    %c0_73 = arith.constant 0 : index
    %c0_74 = arith.constant 0 : index
    %204 = vector.load %arg7[%c0_73, %c0_74] : memref<8x128xf32, #tpu.memory_space<vmem>>, vector<8x128xf32>
    tpu.vector_store %arg7[%c0_73, %c0_74], %203 {strides = array<i32>} : memref<8x128xf32, #tpu.memory_space<vmem>>, vector<8x128xf32>,
    return
  }
  func.func @transform_0(%arg0: i32) -> (i32, i32) {
    %c0_i32 = arith.constant 0 : i32
    %c0_i32_0 = arith.constant 0 : i32
    %c0_i32_1 = arith.constant 0 : i32
    return %c0_i32, %c0_i32_0 : i32, i32
  }
  func.func @transform_1(%arg0: i32) -> (i32, i32) {
    %c0_i32 = arith.constant 0 : i32
    %c0_i32_0 = arith.constant 0 : i32
    %c0_i32_1 = arith.constant 0 : i32
    return %c0_i32, %c0_i32_0 : i32, i32
  }
  func.func @transform_2(%arg0: i32) -> (i32, i32) {
    %c0_i32 = arith.constant 0 : i32
    %c0_i32_0 = arith.constant 0 : i32
    %c0_i32_1 = arith.constant 0 : i32
    return %c0_i32, %c0_i32_0 : i32, i32
  }
  func.func @transform_3(%arg0: i32) -> (i32, i32) {
    %c0_i32 = arith.constant 0 : i32
    %c0_i32_0 = arith.constant 0 : i32
    %c0_i32_1 = arith.constant 0 : i32
    return %c0_i32, %c0_i32_0 : i32, i32
  }
  func.func @transform_4(%arg0: i32) -> (i32, i32) {
    %c0_i32 = arith.constant 0 : i32
    %c0_i32_0 = arith.constant 0 : i32
    %c0_i32_1 = arith.constant 0 : i32
    return %c0_i32, %c0_i32_0 : i32, i32
  }
  func.func @transform_5(%arg0: i32) -> (i32, i32) {
    %c0_i32 = arith.constant 0 : i32
    %c0_i32_0 = arith.constant 0 : i32
    %c0_i32_1 = arith.constant 0 : i32
    return %c0_i32, %c0_i32_0 : i32, i32
  }
  func.func @transform_6(%arg0: i32) -> (i32, i32) {
    %c0_i32 = arith.constant 0 : i32
    %c0_i32_0 = arith.constant 0 : i32
    %c0_i32_1 = arith.constant 0 : i32
    return %c0_i32, %c0_i32_0 : i32, i32
  }
  func.func @transform_7(%arg0: i32) -> (i32, i32) {
    %c0_i32 = arith.constant 0 : i32
    %c0_i32_0 = arith.constant 0 : i32
    %c0_i32_1 = arith.constant 0 : i32
    return %c0_i32, %c0_i32_0 : i32, i32
  }
  func.func @transform_8(%arg0: i32) -> (i32, i32) {
    %c0_i32 = arith.constant 0 : i32
    %c0_i32_0 = arith.constant 0 : i32
    %c0_i32_1 = arith.constant 0 : i32
    return %c0_i32, %c0_i32_0 : i32, i32
  }
}

</mosaic_0001>

<llo_original>
// kernel: tpu_custom_call.1
$region0: #{tpu_custom_call.1}
  #allocation0 [shape = 'u32[]', space=smem, size = 0x4, offset = 0x4, fixed_abs, tag = 'smem constant byte address 0x4 - core index']
  #allocation1 [shape = 'u32[144,128]{1,0:T(1,128)}', space=vmem, size = 0x12000, scoped, tag = 'internal scratch']
  #allocation2 [shape = 'f32[8,128]{1,0:T(8,128)}', space=vmem, size = 0x1000, scoped, tag = 'scratch operand']
  %s0 = inlined_call_operand.hbm [shape: f32[8,512], index: 0, kind: input, shape index: {}]
  %s1 = inlined_call_operand.vmem [shape: f32[1,128], index: 1, kind: input, shape index: {}]
  %s2 = inlined_call_operand.vmem [shape: f32[1,128], index: 2, kind: input, shape index: {}]
  %s3 = inlined_call_operand.hbm [shape: bf16[128,512], index: 3, kind: input, shape index: {}]
  %s4 = inlined_call_operand.hbm [shape: bf16[128,128], index: 4, kind: input, shape index: {}]
  %s5 = inlined_call_operand.vmem [shape: f32[1,128], index: 5, kind: input, shape index: {}]
  %s6 = inlined_call_operand.hbm [shape: f32[8,128], index: 6, kind: output, shape index: {0}]
  %s7 = inlined_call_operand.hbm [shape: f32[1,128], index: 7, kind: output, shape index: {1}]
  %s8 = inlined_call_operand.hbm [shape: f32[1,128], index: 8, kind: output, shape index: {2}]
  %9 = xla_tuple %s6, %s7, %s8
  %s10 = sld [smem:[#allocation0]]
  $region62: #{tpu_custom_call.1} parent=0
    _
  %s12 = ssub.s32 1, %s10
  %s13 = scalar_select 0, %s12, %s10
  $region1: #{tpu_custom_call.1} parent=0
    #allocation3 [shape = 'u8[16384]{0}', space=vmem, size = 0x4000, scoped, tag = 'input window, operand 0, single buffered']
    #allocation4 [shape = 's32[1]{0}', space=sflag, size = 0x4, scoped, tag = 'scoped memory for tpu_custom_call.1']
    #allocation5 [shape = 's32[1]{0}', space=sflag, size = 0x4, scoped, tag = 'scoped memory for tpu_custom_call.1']
    #allocation6 [shape = 'u8[131072]{0}', space=vmem, size = 0x20000, scoped, tag = 'input window, operand 3, single buffered']
    #allocation7 [shape = 's32[1]{0}', space=sflag, size = 0x4, scoped, tag = 'scoped memory for tpu_custom_call.1']
    #allocation8 [shape = 'u8[32768]{0}', space=vmem, size = 0x8000, scoped, tag = 'input window, operand 4, single buffered']
    #allocation9 [shape = 'u8[4096]{0}', space=vmem, size = 0x1000, scoped, tag = 'output window, operand 0, single buffered']
    #allocation10 [shape = 'u8[512]{0}', space=vmem, size = 0x400, scoped, tag = 'output window, operand 1, single buffered']
    #allocation11 [shape = 's32[1]{0}', space=sflag, size = 0x4, scoped, tag = 'scoped memory for tpu_custom_call.1']
    #allocation12 [shape = 'u8[512]{0}', space=vmem, size = 0x400, scoped, tag = 'output window, operand 2, single buffered']
    %14 = vsyncpa [#allocation4], 0
    %15 = vsyncpa [#allocation7], 0
    %16 = vsyncpa [#allocation5], 0
    %17 = vsyncpa [#allocation11], 0
    // Predicated region
    $region2: #{tpu_custom_call.1} parent=1 // pred_check
      _
    $region3: #{tpu_custom_call.1} parent=1 // pred_check_branch
      %19 = sbr.rel (0) target = $region5
    $region4: #{tpu_custom_call.1} parent=1 // pred_region
      %s21 = ssub.s32 512, 512
      %22 = vsyncadd [#allocation4], %s21
      %s24 = sshll.u32 [#allocation3], 4
      %s25 = int_to_ptr.vmem [resolvable:$true] %s24
      %27 = dma.hbm_to_vmem [thread:$0]  %s0, 512, %s25, [#allocation4]
    $region5: #{tpu_custom_call.1} parent=1 // pred_fallthru
      _
    // Predicated region
    $region6: #{tpu_custom_call.1} parent=1 // pred_check
      _
    $region7: #{tpu_custom_call.1} parent=1 // pred_check_branch
      %29 = sbr.rel (0) target = $region9
    $region8: #{tpu_custom_call.1} parent=1 // pred_region
      _
    $region9: #{tpu_custom_call.1} parent=1 // pred_fallthru
      _
    // Predicated region
    $region10: #{tpu_custom_call.1} parent=1 // pred_check
      _
    $region11: #{tpu_custom_call.1} parent=1 // pred_check_branch
      %31 = sbr.rel (0) target = $region13
    $region12: #{tpu_custom_call.1} parent=1 // pred_region
      _
    $region13: #{tpu_custom_call.1} parent=1 // pred_fallthru
      _
    // Predicated region
    $region14: #{tpu_custom_call.1} parent=1 // pred_check
      _
    $region15: #{tpu_custom_call.1} parent=1 // pred_check_branch
      %33 = sbr.rel (0) target = $region17
    $region16: #{tpu_custom_call.1} parent=1 // pred_region
      %s35 = ssub.s32 4096, 4096
      %36 = vsyncadd [#allocation7], %s35
      %s37 = sshll.u32 [#allocation6], 4
      %s38 = int_to_ptr.vmem [resolvable:$true] %s37
      %43 = dma.hbm_to_vmem [thread:$0]  %s3, 4096, %s38, [#allocation7], 256, 256, 16
    $region17: #{tpu_custom_call.1} parent=1 // pred_fallthru
      _
    // Predicated region
    $region18: #{tpu_custom_call.1} parent=1 // pred_check
      _
    $region19: #{tpu_custom_call.1} parent=1 // pred_check_branch
      %45 = sbr.rel (0) target = $region21
    $region20: #{tpu_custom_call.1} parent=1 // pred_region
      %s47 = ssub.s32 1024, 1024
      %48 = vsyncadd [#allocation7], %s47
      %s49 = sshll.u32 [#allocation8], 4
      %s50 = int_to_ptr.vmem [resolvable:$true] %s49
      %55 = dma.hbm_to_vmem [thread:$0]  %s4, 1024, %s50, [#allocation7], 64, 64, 4
    $region21: #{tpu_custom_call.1} parent=1 // pred_fallthru
      _
    // Predicated region
    $region22: #{tpu_custom_call.1} parent=1 // pred_check
      _
    $region23: #{tpu_custom_call.1} parent=1 // pred_check_branch
      %57 = sbr.rel (0) target = $region25
    $region24: #{tpu_custom_call.1} parent=1 // pred_region
      _
    $region25: #{tpu_custom_call.1} parent=1 // pred_fallthru
      _
    // Predicated region
    $region26: #{tpu_custom_call.1} parent=1 // pred_check
      _
    $region27: #{tpu_custom_call.1} parent=1 // pred_check_branch
      %59 = sbr.rel (0) target = $region29
    $region28: #{tpu_custom_call.1} parent=1 // pred_region
      %60 = dma.done [#allocation4], 512
    $region29: #{tpu_custom_call.1} parent=1 // pred_fallthru
      _
    // Predicated region
    $region30: #{tpu_custom_call.1} parent=1 // pred_check
      _
    $region31: #{tpu_custom_call.1} parent=1 // pred_check_branch
      %62 = sbr.rel (0) target = $region33
    $region32: #{tpu_custom_call.1} parent=1 // pred_region
      %63 = dma.done [#allocation7], 4096
    $region33: #{tpu_custom_call.1} parent=1 // pred_fallthru
      _
    // Predicated region
    $region34: #{tpu_custom_call.1} parent=1 // pred_check
      _
    $region35: #{tpu_custom_call.1} parent=1 // pred_check_branch
      %65 = sbr.rel (0) target = $region37
    $region36: #{tpu_custom_call.1} parent=1 // pred_region
      %66 = dma.done [#allocation7], 1024
    $region37: #{tpu_custom_call.1} parent=1 // pred_fallthru
      _
    %68 = vst [vmem:[#allocation2] sm:$0xff] 0.0
    %v69 = vld [vmem:[%s1] sm:$0x1]
    %v70 = vld [vmem:[%s2] sm:$0x1]
    %v71 = vld [vmem:[#allocation3] ss:$8 sm:$0xf]
    %v72 = vpack.c.bf16 %v69, %v69
    %v73 = vld [vmem:[#allocation6] sm:$0xff]
    %v74 = vld [vmem:[#allocation6 + $0x8] sm:$0xff]
    %v75 = vld [vmem:[#allocation6 + $0x10] sm:$0xff]
    %v76 = vld [vmem:[#allocation6 + $0x18] sm:$0xff]
    %v77 = vld [vmem:[#allocation6 + $0x20] sm:$0xff]
    %v78 = vld [vmem:[#allocation6 + $0x28] sm:$0xff]
    %v79 = vld [vmem:[#allocation6 + $0x30] sm:$0xff]
    %v80 = vld [vmem:[#allocation6 + $0x38] sm:$0xff]
    %v81 = vld [vmem:[#allocation6 + $0x40] sm:$0xff]
    %v82 = vld [vmem:[#allocation6 + $0x48] sm:$0xff]
    %v83 = vld [vmem:[#allocation6 + $0x50] sm:$0xff]
    %v84 = vld [vmem:[#allocation6 + $0x58] sm:$0xff]
    %v85 = vld [vmem:[#allocation6 + $0x60] sm:$0xff]
    %v86 = vld [vmem:[#allocation6 + $0x68] sm:$0xff]
    %v87 = vld [vmem:[#allocation6 + $0x70] sm:$0xff]
    %v88 = vld [vmem:[#allocation6 + $0x78] sm:$0xff]
    %v89 = vld [vmem:[#allocation6 + $0x80] sm:$0xff]
    %v90 = vld [vmem:[#allocation6 + $0x88] sm:$0xff]
    %v91 = vld [vmem:[#allocation6 + $0x90] sm:$0xff]
    %v92 = vld [vmem:[#allocation6 + $0x98] sm:$0xff]
    %v93 = vld [vmem:[#allocation6 + $0xa0] sm:$0xff]
    %v94 = vld [vmem:[#allocation6 + $0xa8] sm:$0xff]
    %v95 = vld [vmem:[#allocation6 + $0xb0] sm:$0xff]
    %v96 = vld [vmem:[#allocation6 + $0xb8] sm:$0xff]
    %v97 = vld [vmem:[#allocation6 + $0xc0] sm:$0xff]
    %v98 = vld [vmem:[#allocation6 + $0xc8] sm:$0xff]
    %v99 = vld [vmem:[#allocation6 + $0xd0] sm:$0xff]
    %v100 = vld [vmem:[#allocation6 + $0xd8] sm:$0xff]
    %v101 = vld [vmem:[#allocation6 + $0xe0] sm:$0xff]
    %v102 = vld [vmem:[#allocation6 + $0xe8] sm:$0xff]
    %v103 = vld [vmem:[#allocation6 + $0xf0] sm:$0xff]
    %v104 = vld [vmem:[#allocation6 + $0xf8] sm:$0xff]
    %v137 = vunpack.c.l.b16 %v73
    %v138 = vunpack.c.h.b16 %v73
    %v139 = vunpack.c.l.b16 %v74
    %v140 = vunpack.c.h.b16 %v74
    %v141 = vunpack.c.l.b16 %v75
    %v142 = vunpack.c.h.b16 %v75
    %v143 = vunpack.c.l.b16 %v76
    %v144 = vunpack.c.h.b16 %v76
    %v145 = vunpack.c.l.b16 %v77
    %v146 = vunpack.c.h.b16 %v77
    %v147 = vunpack.c.l.b16 %v78
    %v148 = vunpack.c.h.b16 %v78
    %v149 = vunpack.c.l.b16 %v79
    %v150 = vunpack.c.h.b16 %v79
    %v151 = vunpack.c.l.b16 %v80
    %v152 = vunpack.c.h.b16 %v80
    %v153 = vunpack.c.l.b16 %v81
    %v154 = vunpack.c.h.b16 %v81
    %v155 = vunpack.c.l.b16 %v82
    %v156 = vunpack.c.h.b16 %v82
    %v157 = vunpack.c.l.b16 %v83
    %v158 = vunpack.c.h.b16 %v83
    %v159 = vunpack.c.l.b16 %v84
    %v160 = vunpack.c.h.b16 %v84
    %v161 = vunpack.c.l.b16 %v85
    %v162 = vunpack.c.h.b16 %v85
    %v163 = vunpack.c.l.b16 %v86
    %v164 = vunpack.c.h.b16 %v86
    %v165 = vunpack.c.l.b16 %v87
    %v166 = vunpack.c.h.b16 %v87
    %v167 = vunpack.c.l.b16 %v88
    %v168 = vunpack.c.h.b16 %v88
    %v169 = vunpack.c.l.b16 %v89
    %v170 = vunpack.c.h.b16 %v89
    %v171 = vunpack.c.l.b16 %v90
    %v172 = vunpack.c.h.b16 %v90
    %v173 = vunpack.c.l.b16 %v91
    %v174 = vunpack.c.h.b16 %v91
    %v175 = vunpack.c.l.b16 %v92
    %v176 = vunpack.c.h.b16 %v92
    %v177 = vunpack.c.l.b16 %v93
    %v178 = vunpack.c.h.b16 %v93
    %v179 = vunpack.c.l.b16 %v94
    %v180 = vunpack.c.h.b16 %v94
    %v181 = vunpack.c.l.b16 %v95
    %v182 = vunpack.c.h.b16 %v95
    %v183 = vunpack.c.l.b16 %v96
    %v184 = vunpack.c.h.b16 %v96
    %v185 = vunpack.c.l.b16 %v97
    %v186 = vunpack.c.h.b16 %v97
    %v187 = vunpack.c.l.b16 %v98
    %v188 = vunpack.c.h.b16 %v98
    %v189 = vunpack.c.l.b16 %v99
    %v190 = vunpack.c.h.b16 %v99
    %v191 = vunpack.c.l.b16 %v100
    %v192 = vunpack.c.h.b16 %v100
    %v193 = vunpack.c.l.b16 %v101
    %v194 = vunpack.c.h.b16 %v101
    %v195 = vunpack.c.l.b16 %v102
    %v196 = vunpack.c.h.b16 %v102
    %v197 = vunpack.c.l.b16 %v103
    %v198 = vunpack.c.h.b16 %v103
    %v199 = vunpack.c.l.b16 %v104
    %v200 = vunpack.c.h.b16 %v104
    %v201 = vpack.c.b16 %v141, %v137
    %v202 = vpack.c.b16 %v142, %v138
    %v203 = vpack.c.b16 %v143, %v139
    %v204 = vpack.c.b16 %v144, %v140
    %v205 = vpack.c.b16 %v149, %v145
    %v206 = vpack.c.b16 %v150, %v146
    %v207 = vpack.c.b16 %v151, %v147
    %v208 = vpack.c.b16 %v152, %v148
    %v209 = vpack.c.b16 %v157, %v153
    %v210 = vpack.c.b16 %v158, %v154
    %v211 = vpack.c.b16 %v159, %v155
    %v212 = vpack.c.b16 %v160, %v156
    %v213 = vpack.c.b16 %v165, %v161
    %v214 = vpack.c.b16 %v166, %v162
    %v215 = vpack.c.b16 %v167, %v163
    %v216 = vpack.c.b16 %v168, %v164
    %v217 = vpack.c.b16 %v173, %v169
    %v218 = vpack.c.b16 %v174, %v170
    %v219 = vpack.c.b16 %v175, %v171
    %v220 = vpack.c.b16 %v176, %v172
    %v221 = vpack.c.b16 %v181, %v177
    %v222 = vpack.c.b16 %v182, %v178
    %v223 = vpack.c.b16 %v183, %v179
    %v224 = vpack.c.b16 %v184, %v180
    %v225 = vpack.c.b16 %v189, %v185
    %v226 = vpack.c.b16 %v190, %v186
    %v227 = vpack.c.b16 %v191, %v187
    %v228 = vpack.c.b16 %v192, %v188
    %v229 = vpack.c.b16 %v197, %v193
    %v230 = vpack.c.b16 %v198, %v194
    %v231 = vpack.c.b16 %v199, %v195
    %v232 = vpack.c.b16 %v200, %v196
    %265 = vmatprep.subr.bf16.mxu0 %v230
    %266 = vmatpush1.bf16.msra.mxu0 %v229
    %267 = vmatprep.subr.bf16.mxu0 %v226
    %268 = vmatpush1.bf16.msra.mxu0 %v225
    %269 = vmatprep.subr.bf16.mxu0 %v222
    %270 = vmatpush1.bf16.msra.mxu0 %v221
    %271 = vmatprep.subr.bf16.mxu0 %v218
    %272 = vmatpush1.bf16.msra.mxu0 %v217
    %273 = vmatprep.subr.bf16.mxu0 %v214
    %274 = vmatpush1.bf16.msra.mxu0 %v213
    %275 = vmatprep.subr.bf16.mxu0 %v210
    %276 = vmatpush1.bf16.msra.mxu0 %v209
    %277 = vmatprep.subr.bf16.mxu0 %v206
    %278 = vmatpush1.bf16.msra.mxu0 %v205
    %279 = vmatprep.subr.bf16.mxu0 %v202
    %280 = vmatpush1.bf16.msra.mxu0 %v201
    %281 = vmatprep.subr.bf16.mxu0 0
    %282 = vmatpush2.bf16.msra.mxu0 0
    %283 = vmatprep.subr.bf16.mxu0 0
    %284 = vmatpush2.bf16.msra.mxu0 0
    %285 = vmatprep.subr.bf16.mxu0 0
    %286 = vmatpush2.bf16.msra.mxu0 0
    %287 = vmatprep.subr.bf16.mxu0 0
    %288 = vmatpush2.bf16.msra.mxu0 0
    %289 = vmatprep.subr.bf16.mxu0 0
    %290 = vmatpush2.bf16.msra.mxu0 0
    %291 = vmatprep.subr.bf16.mxu0 0
    %292 = vmatpush2.bf16.msra.mxu0 0
    %293 = vmatprep.subr.bf16.mxu0 0
    %294 = vmatpush2.bf16.msra.mxu0 0
    %295 = vmatprep.subr.bf16.mxu0 0
    %296 = vmatpush2.bf16.msra.mxu0 0
    %297 = vmatprep.mubr.bf16.mxu0 0
    %298 = vmatmul.mubr.bf16.gmra.mxu0 %v72
    %v299 = vpop.f32.mrf.mxu0
    %v300 = vadd.f32 0.0, %v299
    %v301 = vpop.f32.mrf.mxu0
    %v302 = vadd.f32 0.0, %v301
    %v303 = vpop.f32.mrf.mxu0
    %v304 = vpop.f32.mrf.mxu0
    %305 = vdwg.mxu0
    %306 = vmatprep.subr.bf16.mxu0 %v232
    %307 = vmatpush1.bf16.msra.mxu0 %v231
    %308 = vmatprep.subr.bf16.mxu0 %v228
    %309 = vmatpush1.bf16.msra.mxu0 %v227
    %310 = vmatprep.subr.bf16.mxu0 %v224
    %311 = vmatpush1.bf16.msra.mxu0 %v223
    %312 = vmatprep.subr.bf16.mxu0 %v220
    %313 = vmatpush1.bf16.msra.mxu0 %v219
    %314 = vmatprep.subr.bf16.mxu0 %v216
    %315 = vmatpush1.bf16.msra.mxu0 %v215
    %316 = vmatprep.subr.bf16.mxu0 %v212
    %317 = vmatpush1.bf16.msra.mxu0 %v211
    %318 = vmatprep.subr.bf16.mxu0 %v208
    %319 = vmatpush1.bf16.msra.mxu0 %v207
    %320 = vmatprep.subr.bf16.mxu0 %v204
    %321 = vmatpush1.bf16.msra.mxu0 %v203
    %322 = vmatprep.subr.bf16.mxu0 0
    %323 = vmatpush2.bf16.msra.mxu0 0
    %324 = vmatprep.subr.bf16.mxu0 0
    %325 = vmatpush2.bf16.msra.mxu0 0
    %326 = vmatprep.subr.bf16.mxu0 0
    %327 = vmatpush2.bf16.msra.mxu0 0
    %328 = vmatprep.subr.bf16.mxu0 0
    %329 = vmatpush2.bf16.msra.mxu0 0
    %330 = vmatprep.subr.bf16.mxu0 0
    %331 = vmatpush2.bf16.msra.mxu0 0
    %332 = vmatprep.subr.bf16.mxu0 0
    %333 = vmatpush2.bf16.msra.mxu0 0
    %334 = vmatprep.subr.bf16.mxu0 0
    %335 = vmatpush2.bf16.msra.mxu0 0
    %336 = vmatprep.subr.bf16.mxu0 0
    %337 = vmatpush2.bf16.msra.mxu0 0
    %338 = vmatprep.mubr.bf16.mxu0 0
    %339 = vmatmul.mubr.bf16.gmra.mxu0 %v72
    %v340 = vpop.f32.mrf.mxu0
    %v341 = vadd.f32 0.0, %v340
    %v342 = vpop.f32.mrf.mxu0
    %v343 = vadd.f32 0.0, %v342
    %v344 = vpop.f32.mrf.mxu0
    %v345 = vpop.f32.mrf.mxu0
    %346 = vdwg.mxu0
    %v351 = vcombine.low %v300, %v302
    %v352 = vcombine.low %v341, %v343
    %v354 = vunpack.c.l.s4 1966171168
    %v355 = vunpack.c.0.s8 %v354
    %v356 = vlaneseq
    %v357 = vshrl.u32 %v356, 7
    %v358 = vsub.s32 %v355, %v357
    %v359 = vrot.slane %v351, %v358
    %v361 = vunpack.c.l.s4 1966171168
    %v362 = vunpack.c.0.s8 %v361
    %v363 = vlaneseq
    %v364 = vshrl.u32 %v363, 7
    %v365 = vsub.s32 %v362, %v364
    %v366 = vrot.slane %v352, %v365
    %v367 = vcombine.low %v359, %v366
    %v369 = vunpack.c.l.s4 1966171168
    %v370 = vunpack.c.0.s8 %v369
    %v371 = vlaneseq
    %v372 = vshrl.u32 %v371, 7
    %v373 = vsub.s32 %v370, %v372
    %v374 = vrot.slane %v367, %v373
    %v376 = vadd.f32 %v71, %v374
    %v377 = vsub.f32 0.0, %v376
    %v378 = vmul.f32 %v377, 1.442695
    %v379 = vpow.pop %v378
    %v380 = vadd.f32 %v379, 1.0
    %v381 = vrcp.pop %v380
    %v383 = vrot.slane %v376, 1
    %v385 = vsub.f32 0.0, %v383
    %v386 = vmul.f32 %v385, 1.442695
    %v387 = vpow.pop %v386
    %v388 = vadd.f32 %v387, 1.0
    %v389 = vrcp.pop %v388
    %v390 = vrot.slane %v376, 2
    %v392 = vtanh.pop %v390
    %v393 = vrot.slane %v376, 3
    %v395 = vsub.f32 0.0, %v393
    %v396 = vmul.f32 %v395, 1.442695
    %v397 = vpow.pop %v396
    %v398 = vadd.f32 %v397, 1.0
    %v399 = vrcp.pop %v398
    %v400 = vmul.f32 %v389, %v70
    %v401 = vmul.f32 %v381, %v392
    %v402 = vadd.f32 %v400, %v401
    %v403 = vtanh.pop %v402
    %v404 = vmul.f32 %v399, %v403
    %405 = vst [vmem:[#allocation2] sm:$0x1] %v404
    %s406 = scalar_lea.vmem [#allocation3], 1
    %v407 = vld [vmem:[%s406] ss:$8 sm:$0xf]
    %v408 = vpack.c.bf16 %v404, %v404
    %v409 = vld [vmem:[#allocation6] sm:$0xff]
    %v410 = vld [vmem:[#allocation6 + $0x8] sm:$0xff]
    %v411 = vld [vmem:[#allocation6 + $0x10] sm:$0xff]
    %v412 = vld [vmem:[#allocation6 + $0x18] sm:$0xff]
    %v413 = vld [vmem:[#allocation6 + $0x20] sm:$0xff]
    %v414 = vld [vmem:[#allocation6 + $0x28] sm:$0xff]
    %v415 = vld [vmem:[#allocation6 + $0x30] sm:$0xff]
    %v416 = vld [vmem:[#allocation6 + $0x38] sm:$0xff]
    %v417 = vld [vmem:[#allocation6 + $0x40] sm:$0xff]
    %v418 = vld [vmem:[#allocation6 + $0x48] sm:$0xff]
    %v419 = vld [vmem:[#allocation6 + $0x50] sm:$0xff]
    %v420 = vld [vmem:[#allocation6 + $0x58] sm:$0xff]
    %v421 = vld [vmem:[#allocation6 + $0x60] sm:$0xff]
    %v422 = vld [vmem:[#allocation6 + $0x68] sm:$0xff]
    %v423 = vld [vmem:[#allocation6 + $0x70] sm:$0xff]
    %v424 = vld [vmem:[#allocation6 + $0x78] sm:$0xff]
    %v425 = vld [vmem:[#allocation6 + $0x80] sm:$0xff]
    %v426 = vld [vmem:[#allocation6 + $0x88] sm:$0xff]
    %v427 = vld [vmem:[#allocation6 + $0x90] sm:$0xff]
    %v428 = vld [vmem:[#allocation6 + $0x98] sm:$0xff]
    %v429 = vld [vmem:[#allocation6 + $0xa0] sm:$0xff]
    %v430 = vld [vmem:[#allocation6 + $0xa8] sm:$0xff]
    %v431 = vld [vmem:[#allocation6 + $0xb0] sm:$0xff]
    %v432 = vld [vmem:[#allocation6 + $0xb8] sm:$0xff]
    %v433 = vld [vmem:[#allocation6 + $0xc0] sm:$0xff]
    %v434 = vld [vmem:[#allocation6 + $0xc8] sm:$0xff]
    %v435 = vld [vmem:[#allocation6 + $0xd0] sm:$0xff]
    %v436 = vld [vmem:[#allocation6 + $0xd8] sm:$0xff]
    %v437 = vld [vmem:[#allocation6 + $0xe0] sm:$0xff]
    %v438 = vld [vmem:[#allocation6 + $0xe8] sm:$0xff]
    %v439 = vld [vmem:[#allocation6 + $0xf0] sm:$0xff]
    %v440 = vld [vmem:[#allocation6 + $0xf8] sm:$0xff]
    %v473 = vunpack.c.l.b16 %v409
    %v474 = vunpack.c.h.b16 %v409
    %v475 = vunpack.c.l.b16 %v410
    %v476 = vunpack.c.h.b16 %v410
    %v477 = vunpack.c.l.b16 %v411
    %v478 = vunpack.c.h.b16 %v411
    %v479 = vunpack.c.l.b16 %v412
    %v480 = vunpack.c.h.b16 %v412
    %v481 = vunpack.c.l.b16 %v413
    %v482 = vunpack.c.h.b16 %v413
    %v483 = vunpack.c.l.b16 %v414
    %v484 = vunpack.c.h.b16 %v414
    %v485 = vunpack.c.l.b16 %v415
    %v486 = vunpack.c.h.b16 %v415
    %v487 = vunpack.c.l.b16 %v416
    %v488 = vunpack.c.h.b16 %v416
    %v489 = vunpack.c.l.b16 %v417
    %v490 = vunpack.c.h.b16 %v417
    %v491 = vunpack.c.l.b16 %v418
    %v492 = vunpack.c.h.b16 %v418
    %v493 = vunpack.c.l.b16 %v419
    %v494 = vunpack.c.h.b16 %v419
    %v495 = vunpack.c.l.b16 %v420
    %v496 = vunpack.c.h.b16 %v420
    %v497 = vunpack.c.l.b16 %v421
    %v498 = vunpack.c.h.b16 %v421
    %v499 = vunpack.c.l.b16 %v422
    %v500 = vunpack.c.h.b16 %v422
    %v501 = vunpack.c.l.b16 %v423
    %v502 = vunpack.c.h.b16 %v423
    %v503 = vunpack.c.l.b16 %v424
    %v504 = vunpack.c.h.b16 %v424
    %v505 = vunpack.c.l.b16 %v425
    %v506 = vunpack.c.h.b16 %v425
    %v507 = vunpack.c.l.b16 %v426
    %v508 = vunpack.c.h.b16 %v426
    %v509 = vunpack.c.l.b16 %v427
    %v510 = vunpack.c.h.b16 %v427
    %v511 = vunpack.c.l.b16 %v428
    %v512 = vunpack.c.h.b16 %v428
    %v513 = vunpack.c.l.b16 %v429
    %v514 = vunpack.c.h.b16 %v429
    %v515 = vunpack.c.l.b16 %v430
    %v516 = vunpack.c.h.b16 %v430
    %v517 = vunpack.c.l.b16 %v431
    %v518 = vunpack.c.h.b16 %v431
    %v519 = vunpack.c.l.b16 %v432
    %v520 = vunpack.c.h.b16 %v432
    %v521 = vunpack.c.l.b16 %v433
    %v522 = vunpack.c.h.b16 %v433
    %v523 = vunpack.c.l.b16 %v434
    %v524 = vunpack.c.h.b16 %v434
    %v525 = vunpack.c.l.b16 %v435
    %v526 = vunpack.c.h.b16 %v435
    %v527 = vunpack.c.l.b16 %v436
    %v528 = vunpack.c.h.b16 %v436
    %v529 = vunpack.c.l.b16 %v437
    %v530 = vunpack.c.h.b16 %v437
    %v531 = vunpack.c.l.b16 %v438
    %v532 = vunpack.c.h.b16 %v438
    %v533 = vunpack.c.l.b16 %v439
    %v534 = vunpack.c.h.b16 %v439
    %v535 = vunpack.c.l.b16 %v440
    %v536 = vunpack.c.h.b16 %v440
    %v537 = vpack.c.b16 %v477, %v473
    %v538 = vpack.c.b16 %v478, %v474
    %v539 = vpack.c.b16 %v479, %v475
    %v540 = vpack.c.b16 %v480, %v476
    %v541 = vpack.c.b16 %v485, %v481
    %v542 = vpack.c.b16 %v486, %v482
    %v543 = vpack.c.b16 %v487, %v483
    %v544 = vpack.c.b16 %v488, %v484
    %v545 = vpack.c.b16 %v493, %v489
    %v546 = vpack.c.b16 %v494, %v490
    %v547 = vpack.c.b16 %v495, %v491
    %v548 = vpack.c.b16 %v496, %v492
    %v549 = vpack.c.b16 %v501, %v497
    %v550 = vpack.c.b16 %v502, %v498
    %v551 = vpack.c.b16 %v503, %v499
    %v552 = vpack.c.b16 %v504, %v500
    %v553 = vpack.c.b16 %v509, %v505
    %v554 = vpack.c.b16 %v510, %v506
    %v555 = vpack.c.b16 %v511, %v507
    %v556 = vpack.c.b16 %v512, %v508
    %v557 = vpack.c.b16 %v517, %v513
    %v558 = vpack.c.b16 %v518, %v514
    %v559 = vpack.c.b16 %v519, %v515
    %v560 = vpack.c.b16 %v520, %v516
    %v561 = vpack.c.b16 %v525, %v521
    %v562 = vpack.c.b16 %v526, %v522
    %v563 = vpack.c.b16 %v527, %v523
    %v564 = vpack.c.b16 %v528, %v524
    %v565 = vpack.c.b16 %v533, %v529
    %v566 = vpack.c.b16 %v534, %v530
    %v567 = vpack.c.b16 %v535, %v531
    %v568 = vpack.c.b16 %v536, %v532
    %601 = vmatprep.subr.bf16.mxu0 %v566
    %602 = vmatpush1.bf16.msra.mxu0 %v565
    %603 = vmatprep.subr.bf16.mxu0 %v562
    %604 = vmatpush1.bf16.msra.mxu0 %v561
    %605 = vmatprep.subr.bf16.mxu0 %v558
    %606 = vmatpush1.bf16.msra.mxu0 %v557
    %607 = vmatprep.subr.bf16.mxu0 %v554
    %608 = vmatpush1.bf16.msra.mxu0 %v553
    %609 = vmatprep.subr.bf16.mxu0 %v550
    %610 = vmatpush1.bf16.msra.mxu0 %v549
    %611 = vmatprep.subr.bf16.mxu0 %v546
    %612 = vmatpush1.bf16.msra.mxu0 %v545
    %613 = vmatprep.subr.bf16.mxu0 %v542
    %614 = vmatpush1.bf16.msra.mxu0 %v541
    %615 = vmatprep.subr.bf16.mxu0 %v538
    %616 = vmatpush1.bf16.msra.mxu0 %v537
    %617 = vmatprep.subr.bf16.mxu0 0
    %618 = vmatpush2.bf16.msra.mxu0 0
    %619 = vmatprep.subr.bf16.mxu0 0
    %620 = vmatpush2.bf16.msra.mxu0 0
    %621 = vmatprep.subr.bf16.mxu0 0
    %622 = vmatpush2.bf16.msra.mxu0 0
    %623 = vmatprep.subr.bf16.mxu0 0
    %624 = vmatpush2.bf16.msra.mxu0 0
    %625 = vmatprep.subr.bf16.mxu0 0
    %626 = vmatpush2.bf16.msra.mxu0 0
    %627 = vmatprep.subr.bf16.mxu0 0
    %628 = vmatpush2.bf16.msra.mxu0 0
    %629 = vmatprep.subr.bf16.mxu0 0
    %630 = vmatpush2.bf16.msra.mxu0 0
    %631 = vmatprep.subr.bf16.mxu0 0
    %632 = vmatpush2.bf16.msra.mxu0 0
    %633 = vmatprep.mubr.bf16.mxu0 0
    %634 = vmatmul.mubr.bf16.gmra.mxu0 %v408
    %v635 = vpop.f32.mrf.mxu0
    %v636 = vadd.f32 0.0, %v635
    %v637 = vpop.f32.mrf.mxu0
    %v638 = vadd.f32 0.0, %v637
    %v639 = vpop.f32.mrf.mxu0
    %v640 = vpop.f32.mrf.mxu0
    %641 = vdwg.mxu0
    %642 = vmatprep.subr.bf16.mxu0 %v568
    %643 = vmatpush1.bf16.msra.mxu0 %v567
    %644 = vmatprep.subr.bf16.mxu0 %v564
    %645 = vmatpush1.bf16.msra.mxu0 %v563
    %646 = vmatprep.subr.bf16.mxu0 %v560
    %647 = vmatpush1.bf16.msra.mxu0 %v559
    %648 = vmatprep.subr.bf16.mxu0 %v556
    %649 = vmatpush1.bf16.msra.mxu0 %v555
    %650 = vmatprep.subr.bf16.mxu0 %v552
    %651 = vmatpush1.bf16.msra.mxu0 %v551
    %652 = vmatprep.subr.bf16.mxu0 %v548
    %653 = vmatpush1.bf16.msra.mxu0 %v547
    %654 = vmatprep.subr.bf16.mxu0 %v544
    %655 = vmatpush1.bf16.msra.mxu0 %v543
    %656 = vmatprep.subr.bf16.mxu0 %v540
    %657 = vmatpush1.bf16.msra.mxu0 %v539
    %658 = vmatprep.subr.bf16.mxu0 0
    %659 = vmatpush2.bf16.msra.mxu0 0
    %660 = vmatprep.subr.bf16.mxu0 0
    %661 = vmatpush2.bf16.msra.mxu0 0
    %662 = vmatprep.subr.bf16.mxu0 0
    %663 = vmatpush2.bf16.msra.mxu0 0
    %664 = vmatprep.subr.bf16.mxu0 0
    %665 = vmatpush2.bf16.msra.mxu0 0
    %666 = vmatprep.subr.bf16.mxu0 0
    %667 = vmatpush2.bf16.msra.mxu0 0
    %668 = vmatprep.subr.bf16.mxu0 0
    %669 = vmatpush2.bf16.msra.mxu0 0
    %670 = vmatprep.subr.bf16.mxu0 0
    %671 = vmatpush2.bf16.msra.mxu0 0
    %672 = vmatprep.subr.bf16.mxu0 0
    %673 = vmatpush2.bf16.msra.mxu0 0
    %674 = vmatprep.mubr.bf16.mxu0 0
    %675 = vmatmul.mubr.bf16.gmra.mxu0 %v408
    %v676 = vpop.f32.mrf.mxu0
    %v677 = vadd.f32 0.0, %v676
    %v678 = vpop.f32.mrf.mxu0
    %v679 = vadd.f32 0.0, %v678
    %v680 = vpop.f32.mrf.mxu0
    %v681 = vpop.f32.mrf.mxu0
    %682 = vdwg.mxu0
    %v687 = vcombine.low %v636, %v638
    %v688 = vcombine.low %v677, %v679
    %v690 = vunpack.c.l.s4 1966171168
    %v691 = vunpack.c.0.s8 %v690
    %v692 = vlaneseq
    %v693 = vshrl.u32 %v692, 7
    %v694 = vsub.s32 %v691, %v693
    %v695 = vrot.slane %v687, %v694
    %v697 = vunpack.c.l.s4 1966171168
    %v698 = vunpack.c.0.s8 %v697
    %v699 = vlaneseq
    %v700 = vshrl.u32 %v699, 7
    %v701 = vsub.s32 %v698, %v700
    %v702 = vrot.slane %v688, %v701
    %v703 = vcombine.low %v695, %v702
    %v705 = vunpack.c.l.s4 1966171168
    %v706 = vunpack.c.0.s8 %v705
    %v707 = vlaneseq
    %v708 = vshrl.u32 %v707, 7
    %v709 = vsub.s32 %v706, %v708
    %v710 = vrot.slane %v703, %v709
    %v712 = vadd.f32 %v407, %v710
    %v713 = vsub.f32 0.0, %v712
    %v714 = vmul.f32 %v713, 1.442695
    %v715 = vpow.pop %v714
    %v716 = vadd.f32 %v715, 1.0
    %v717 = vrcp.pop %v716
    %v719 = vrot.slane %v712, 1
    %v721 = vsub.f32 0.0, %v719
    %v722 = vmul.f32 %v721, 1.442695
    %v723 = vpow.pop %v722
    %v724 = vadd.f32 %v723, 1.0
    %v725 = vrcp.pop %v724
    %v726 = vrot.slane %v712, 2
    %v728 = vtanh.pop %v726
    %v729 = vrot.slane %v712, 3
    %v731 = vsub.f32 0.0, %v729
    %v732 = vmul.f32 %v731, 1.442695
    %v733 = vpow.pop %v732
    %v734 = vadd.f32 %v733, 1.0
    %v735 = vrcp.pop %v734
    %v736 = vmul.f32 %v725, %v402
    %v737 = vmul.f32 %v717, %v728
    %v738 = vadd.f32 %v736, %v737
    %v739 = vtanh.pop %v738
    %v740 = vmul.f32 %v735, %v739
    %741 = vst [vmem:[#allocation2 + $0x1] sm:$0x1] %v740
    %s742 = scalar_lea.vmem [#allocation3], 2
    %v743 = vld [vmem:[%s742] ss:$8 sm:$0xf]
    %v744 = vpack.c.bf16 %v740, %v740
    %v745 = vld [vmem:[#allocation6] sm:$0xff]
    %v746 = vld [vmem:[#allocation6 + $0x8] sm:$0xff]
    %v747 = vld [vmem:[#allocation6 + $0x10] sm:$0xff]
    %v748 = vld [vmem:[#allocation6 + $0x18] sm:$0xff]
    %v749 = vld [vmem:[#allocation6 + $0x20] sm:$0xff]
    %v750 = vld [vmem:[#allocation6 + $0x28] sm:$0xff]
    %v751 = vld [vmem:[#allocation6 + $0x30] sm:$0xff]
    %v752 = vld [vmem:[#allocation6 + $0x38] sm:$0xff]
    %v753 = vld [vmem:[#allocation6 + $0x40] sm:$0xff]
    %v754 = vld [vmem:[#allocation6 + $0x48] sm:$0xff]
    %v755 = vld [vmem:[#allocation6 + $0x50] sm:$0xff]
    %v756 = vld [vmem:[#allocation6 + $0x58] sm:$0xff]
    %v757 = vld [vmem:[#allocation6 + $0x60] sm:$0xff]
    %v758 = vld [vmem:[#allocation6 + $0x68] sm:$0xff]
    %v759 = vld [vmem:[#allocation6 + $0x70] sm:$0xff]
    %v760 = vld [vmem:[#allocation6 + $0x78] sm:$0xff]
    %v761 = vld [vmem:[#allocation6 + $0x80] sm:$0xff]
    %v762 = vld [vmem:[#allocation6 + $0x88] sm:$0xff]
    %v763 = vld [vmem:[#allocation6 + $0x90] sm:$0xff]
    %v764 = vld [vmem:[#allocation6 + $0x98] sm:$0xff]
    %v765 = vld [vmem:[#allocation6 + $0xa0] sm:$0xff]
    %v766 = vld [vmem:[#allocation6 + $0xa8] sm:$0xff]
    %v767 = vld [vmem:[#allocation6 + $0xb0] sm:$0xff]
    %v768 = vld [vmem:[#allocation6 + $0xb8] sm:$0xff]
    %v769 = vld [vmem:[#allocation6 + $0xc0] sm:$0xff]
    %v770 = vld [vmem:[#allocation6 + $0xc8] sm:$0xff]
    %v771 = vld [vmem:[#allocation6 + $0xd0] sm:$0xff]
    %v772 = vld [vmem:[#allocation6 + $0xd8] sm:$0xff]
    %v773 = vld [vmem:[#allocation6 + $0xe0] sm:$0xff]
    %v774 = vld [vmem:[#allocation6 + $0xe8] sm:$0xff]
    %v775 = vld [vmem:[#allocation6 + $0xf0] sm:$0xff]
    %v776 = vld [vmem:[#allocation6 + $0xf8] sm:$0xff]
    %v809 = vunpack.c.l.b16 %v745
    %v810 = vunpack.c.h.b16 %v745
    %v811 = vunpack.c.l.b16 %v746
    %v812 = vunpack.c.h.b16 %v746
    %v813 = vunpack.c.l.b16 %v747
    %v814 = vunpack.c.h.b16 %v747
    %v815 = vunpack.c.l.b16 %v748
    %v816 = vunpack.c.h.b16 %v748
    %v817 = vunpack.c.l.b16 %v749
    %v818 = vunpack.c.h.b16 %v749
    %v819 = vunpack.c.l.b16 %v750
    %v820 = vunpack.c.h.b16 %v750
    %v821 = vunpack.c.l.b16 %v751
    %v822 = vunpack.c.h.b16 %v751
    %v823 = vunpack.c.l.b16 %v752
    %v824 = vunpack.c.h.b16 %v752
    %v825 = vunpack.c.l.b16 %v753
    %v826 = vunpack.c.h.b16 %v753
    %v827 = vunpack.c.l.b16 %v754
    %v828 = vunpack.c.h.b16 %v754
    %v829 = vunpack.c.l.b16 %v755
    %v830 = vunpack.c.h.b16 %v755
    %v831 = vunpack.c.l.b16 %v756
    %v832 = vunpack.c.h.b16 %v756
    %v833 = vunpack.c.l.b16 %v757
    %v834 = vunpack.c.h.b16 %v757
    %v835 = vunpack.c.l.b16 %v758
    %v836 = vunpack.c.h.b16 %v758
    %v837 = vunpack.c.l.b16 %v759
    %v838 = vunpack.c.h.b16 %v759
    %v839 = vunpack.c.l.b16 %v760
    %v840 = vunpack.c.h.b16 %v760
    %v841 = vunpack.c.l.b16 %v761
    %v842 = vunpack.c.h.b16 %v761
    %v843 = vunpack.c.l.b16 %v762
    %v844 = vunpack.c.h.b16 %v762
    %v845 = vunpack.c.l.b16 %v763
    %v846 = vunpack.c.h.b16 %v763
    %v847 = vunpack.c.l.b16 %v764
    %v848 = vunpack.c.h.b16 %v764
    %v849 = vunpack.c.l.b16 %v765
    %v850 = vunpack.c.h.b16 %v765
    %v851 = vunpack.c.l.b16 %v766
    %v852 = vunpack.c.h.b16 %v766
    %v853 = vunpack.c.l.b16 %v767
    %v854 = vunpack.c.h.b16 %v767
    %v855 = vunpack.c.l.b16 %v768
    %v856 = vunpack.c.h.b16 %v768
    %v857 = vunpack.c.l.b16 %v769
    %v858 = vunpack.c.h.b16 %v769
    %v859 = vunpack.c.l.b16 %v770
    %v860 = vunpack.c.h.b16 %v770
    %v861 = vunpack.c.l.b16 %v771
    %v862 = vunpack.c.h.b16 %v771
    %v863 = vunpack.c.l.b16 %v772
    %v864 = vunpack.c.h.b16 %v772
    %v865 = vunpack.c.l.b16 %v773
    %v866 = vunpack.c.h.b16 %v773
    %v867 = vunpack.c.l.b16 %v774
    %v868 = vunpack.c.h.b16 %v774
    %v869 = vunpack.c.l.b16 %v775
    %v870 = vunpack.c.h.b16 %v775
    %v871 = vunpack.c.l.b16 %v776
    %v872 = vunpack.c.h.b16 %v776
    %v873 = vpack.c.b16 %v813, %v809
    %v874 = vpack.c.b16 %v814, %v810
    %v875 = vpack.c.b16 %v815, %v811
    %v876 = vpack.c.b16 %v816, %v812
    %v877 = vpack.c.b16 %v821, %v817
    %v878 = vpack.c.b16 %v822, %v818
    %v879 = vpack.c.b16 %v823, %v819
    %v880 = vpack.c.b16 %v824, %v820
    %v881 = vpack.c.b16 %v829, %v825
    %v882 = vpack.c.b16 %v830, %v826
    %v883 = vpack.c.b16 %v831, %v827
    %v884 = vpack.c.b16 %v832, %v828
    %v885 = vpack.c.b16 %v837, %v833
    %v886 = vpack.c.b16 %v838, %v834
    %v887 = vpack.c.b16 %v839, %v835
    %v888 = vpack.c.b16 %v840, %v836
    %v889 = vpack.c.b16 %v845, %v841
    %v890 = vpack.c.b16 %v846, %v842
    %v891 = vpack.c.b16 %v847, %v843
    %v892 = vpack.c.b16 %v848, %v844
    %v893 = vpack.c.b16 %v853, %v849
    %v894 = vpack.c.b16 %v854, %v850
    %v895 = vpack.c.b16 %v855, %v851
    %v896 = vpack.c.b16 %v856, %v852
    %v897 = vpack.c.b16 %v861, %v857
    %v898 = vpack.c.b16 %v862, %v858
    %v899 = vpack.c.b16 %v863, %v859
    %v900 = vpack.c.b16 %v864, %v860
    %v901 = vpack.c.b16 %v869, %v865
    %v902 = vpack.c.b16 %v870, %v866
    %v903 = vpack.c.b16 %v871, %v867
    %v904 = vpack.c.b16 %v872, %v868
    %937 = vmatprep.subr.bf16.mxu0 %v902
    %938 = vmatpush1.bf16.msra.mxu0 %v901
    %939 = vmatprep.subr.bf16.mxu0 %v898
    %940 = vmatpush1.bf16.msra.mxu0 %v897
    %941 = vmatprep.subr.bf16.mxu0 %v894
    %942 = vmatpush1.bf16.msra.mxu0 %v893
    %943 = vmatprep.subr.bf16.mxu0 %v890
    %944 = vmatpush1.bf16.msra.mxu0 %v889
    %945 = vmatprep.subr.bf16.mxu0 %v886
    %946 = vmatpush1.bf16.msra.mxu0 %v885
    %947 = vmatprep.subr.bf16.mxu0 %v882
    %948 = vmatpush1.bf16.msra.mxu0 %v881
    %949 = vmatprep.subr.bf16.mxu0 %v878
    %950 = vmatpush1.bf16.msra.mxu0 %v877
    %951 = vmatprep.subr.bf16.mxu0 %v874
    %952 = vmatpush1.bf16.msra.mxu0 %v873
    %953 = vmatprep.subr.bf16.mxu0 0
    %954 = vmatpush2.bf16.msra.mxu0 0
    %955 = vmatprep.subr.bf16.mxu0 0
    %956 = vmatpush2.bf16.msra.mxu0 0
    %957 = vmatprep.subr.bf16.mxu0 0
    %958 = vmatpush2.bf16.msra.mxu0 0
    %959 = vmatprep.subr.bf16.mxu0 0
    %960 = vmatpush2.bf16.msra.mxu0 0
    %961 = vmatprep.subr.bf16.mxu0 0
    %962 = vmatpush2.bf16.msra.mxu0 0
    %963 = vmatprep.subr.bf16.mxu0 0
    %964 = vmatpush2.bf16.msra.mxu0 0
    %965 = vmatprep.subr.bf16.mxu0 0
    %966 = vmatpush2.bf16.msra.mxu0 0
    %967 = vmatprep.subr.bf16.mxu0 0
    %968 = vmatpush2.bf16.msra.mxu0 0
    %969 = vmatprep.mubr.bf16.mxu0 0
    %970 = vmatmul.mubr.bf16.gmra.mxu0 %v744
    %v971 = vpop.f32.mrf.mxu0
    %v972 = vadd.f32 0.0, %v971
    %v973 = vpop.f32.mrf.mxu0
    %v974 = vadd.f32 0.0, %v973
    %v975 = vpop.f32.mrf.mxu0
    %v976 = vpop.f32.mrf.mxu0
    %977 = vdwg.mxu0
    %978 = vmatprep.subr.bf16.mxu0 %v904
    %979 = vmatpush1.bf16.msra.mxu0 %v903
    %980 = vmatprep.subr.bf16.mxu0 %v900
    %981 = vmatpush1.bf16.msra.mxu0 %v899
    %982 = vmatprep.subr.bf16.mxu0 %v896
    %983 = vmatpush1.bf16.msra.mxu0 %v895
    %984 = vmatprep.subr.bf16.mxu0 %v892
    %985 = vmatpush1.bf16.msra.mxu0 %v891
    %986 = vmatprep.subr.bf16.mxu0 %v888
    %987 = vmatpush1.bf16.msra.mxu0 %v887
    %988 = vmatprep.subr.bf16.mxu0 %v884
    %989 = vmatpush1.bf16.msra.mxu0 %v883
    %990 = vmatprep.subr.bf16.mxu0 %v880
    %991 = vmatpush1.bf16.msra.mxu0 %v879
    %992 = vmatprep.subr.bf16.mxu0 %v876
    %993 = vmatpush1.bf16.msra.mxu0 %v875
    %994 = vmatprep.subr.bf16.mxu0 0
    %995 = vmatpush2.bf16.msra.mxu0 0
    %996 = vmatprep.subr.bf16.mxu0 0
    %997 = vmatpush2.bf16.msra.mxu0 0
    %998 = vmatprep.subr.bf16.mxu0 0
    %999 = vmatpush2.bf16.msra.mxu0 0
    %1000 = vmatprep.subr.bf16.mxu0 0
    %1001 = vmatpush2.bf16.msra.mxu0 0
    %1002 = vmatprep.subr.bf16.mxu0 0
    %1003 = vmatpush2.bf16.msra.mxu0 0
    %1004 = vmatprep.subr.bf16.mxu0 0
    %1005 = vmatpush2.bf16.msra.mxu0 0
    %1006 = vmatprep.subr.bf16.mxu0 0
    %1007 = vmatpush2.bf16.msra.mxu0 0
    %1008 = vmatprep.subr.bf16.mxu0 0
    %1009 = vmatpush2.bf16.msra.mxu0 0
    %1010 = vmatprep.mubr.bf16.mxu0 0
    %1011 = vmatmul.mubr.bf16.gmra.mxu0 %v744
    %v1012 = vpop.f32.mrf.mxu0
    %v1013 = vadd.f32 0.0, %v1012
    %v1014 = vpop.f32.mrf.mxu0
    %v1015 = vadd.f32 0.0, %v1014
    %v1016 = vpop.f32.mrf.mxu0
    %v1017 = vpop.f32.mrf.mxu0
    %1018 = vdwg.mxu0
    %v1023 = vcombine.low %v972, %v974
    %v1024 = vcombine.low %v1013, %v1015
    %v1026 = vunpack.c.l.s4 1966171168
    %v1027 = vunpack.c.0.s8 %v1026
    %v1028 = vlaneseq
    %v1029 = vshrl.u32 %v1028, 7
    %v1030 = vsub.s32 %v1027, %v1029
    %v1031 = vrot.slane %v1023, %v1030
    %v1033 = vunpack.c.l.s4 1966171168
    %v1034 = vunpack.c.0.s8 %v1033
    %v1035 = vlaneseq
    %v1036 = vshrl.u32 %v1035, 7
    %v1037 = vsub.s32 %v1034, %v1036
    %v1038 = vrot.slane %v1024, %v1037
    %v1039 = vcombine.low %v1031, %v1038
    %v1041 = vunpack.c.l.s4 1966171168
    %v1042 = vunpack.c.0.s8 %v1041
    %v1043 = vlaneseq
    %v1044 = vshrl.u32 %v1043, 7
    %v1045 = vsub.s32 %v1042, %v1044
    %v1046 = vrot.slane %v1039, %v1045
    %v1048 = vadd.f32 %v743, %v1046
    %v1049 = vsub.f32 0.0, %v1048
    %v1050 = vmul.f32 %v1049, 1.442695
    %v1051 = vpow.pop %v1050
    %v1052 = vadd.f32 %v1051, 1.0
    %v1053 = vrcp.pop %v1052
    %v1055 = vrot.slane %v1048, 1
    %v1057 = vsub.f32 0.0, %v1055
    %v1058 = vmul.f32 %v1057, 1.442695
    %v1059 = vpow.pop %v1058
    %v1060 = vadd.f32 %v1059, 1.0
    %v1061 = vrcp.pop %v1060
    %v1062 = vrot.slane %v1048, 2
    %v1064 = vtanh.pop %v1062
    %v1065 = vrot.slane %v1048, 3
    %v1067 = vsub.f32 0.0, %v1065
    %v1068 = vmul.f32 %v1067, 1.442695
    %v1069 = vpow.pop %v1068
    %v1070 = vadd.f32 %v1069, 1.0
    %v1071 = vrcp.pop %v1070
    %v1072 = vmul.f32 %v1061, %v738
    %v1073 = vmul.f32 %v1053, %v1064
    %v1074 = vadd.f32 %v1072, %v1073
    %v1075 = vtanh.pop %v1074
    %v1076 = vmul.f32 %v1071, %v1075
    %1077 = vst [vmem:[#allocation2 + $0x2] sm:$0x1] %v1076
    %s1078 = scalar_lea.vmem [#allocation3], 3
    %v1079 = vld [vmem:[%s1078] ss:$8 sm:$0xf]
    %v1080 = vpack.c.bf16 %v1076, %v1076
    %v1081 = vld [vmem:[#allocation6] sm:$0xff]
    %v1082 = vld [vmem:[#allocation6 + $0x8] sm:$0xff]
    %v1083 = vld [vmem:[#allocation6 + $0x10] sm:$0xff]
    %v1084 = vld [vmem:[#allocation6 + $0x18] sm:$0xff]
    %v1085 = vld [vmem:[#allocation6 + $0x20] sm:$0xff]
    %v1086 = vld [vmem:[#allocation6 + $0x28] sm:$0xff]
    %v1087 = vld [vmem:[#allocation6 + $0x30] sm:$0xff]
    %v1088 = vld [vmem:[#allocation6 + $0x38] sm:$0xff]
    %v1089 = vld [vmem:[#allocation6 + $0x40] sm:$0xff]
    %v1090 = vld [vmem:[#allocation6 + $0x48] sm:$0xff]
    %v1091 = vld [vmem:[#allocation6 + $0x50] sm:$0xff]
    %v1092 = vld [vmem:[#allocation6 + $0x58] sm:$0xff]
    %v1093 = vld [vmem:[#allocation6 + $0x60] sm:$0xff]
    %v1094 = vld [vmem:[#allocation6 + $0x68] sm:$0xff]
    %v1095 = vld [vmem:[#allocation6 + $0x70] sm:$0xff]
    %v1096 = vld [vmem:[#allocation6 + $0x78] sm:$0xff]
    %v1097 = vld [vmem:[#allocation6 + $0x80] sm:$0xff]
    %v1098 = vld [vmem:[#allocation6 + $0x88] sm:$0xff]
    %v1099 = vld [vmem:[#allocation6 + $0x90] sm:$0xff]
    %v1100 = vld [vmem:[#allocation6 + $0x98] sm:$0xff]
    %v1101 = vld [vmem:[#allocation6 + $0xa0] sm:$0xff]
    %v1102 = vld [vmem:[#allocation6 + $0xa8] sm:$0xff]
    %v1103 = vld [vmem:[#allocation6 + $0xb0] sm:$0xff]
    %v1104 = vld [vmem:[#allocation6 + $0xb8] sm:$0xff]
    %v1105 = vld [vmem:[#allocation6 + $0xc0] sm:$0xff]
    %v1106 = vld [vmem:[#allocation6 + $0xc8] sm:$0xff]
    %v1107 = vld [vmem:[#allocation6 + $0xd0] sm:$0xff]
    %v1108 = vld [vmem:[#allocation6 + $0xd8] sm:$0xff]
    %v1109 = vld [vmem:[#allocation6 + $0xe0] sm:$0xff]
    %v1110 = vld [vmem:[#allocation6 + $0xe8] sm:$0xff]
    %v1111 = vld [vmem:[#allocation6 + $0xf0] sm:$0xff]
    %v1112 = vld [vmem:[#allocation6 + $0xf8] sm:$0xff]
    %v1145 = vunpack.c.l.b16 %v1081
    %v1146 = vunpack.c.h.b16 %v1081
    %v1147 = vunpack.c.l.b16 %v1082
    %v1148 = vunpack.c.h.b16 %v1082
    %v1149 = vunpack.c.l.b16 %v1083
    %v1150 = vunpack.c.h.b16 %v1083
    %v1151 = vunpack.c.l.b16 %v1084
    %v1152 = vunpack.c.h.b16 %v1084
    %v1153 = vunpack.c.l.b16 %v1085
    %v1154 = vunpack.c.h.b16 %v1085
    %v1155 = vunpack.c.l.b16 %v1086
    %v1156 = vunpack.c.h.b16 %v1086
    %v1157 = vunpack.c.l.b16 %v1087
    %v1158 = vunpack.c.h.b16 %v1087
    %v1159 = vunpack.c.l.b16 %v1088
    %v1160 = vunpack.c.h.b16 %v1088
    %v1161 = vunpack.c.l.b16 %v1089
    %v1162 = vunpack.c.h.b16 %v1089
    %v1163 = vunpack.c.l.b16 %v1090
    %v1164 = vunpack.c.h.b16 %v1090
    %v1165 = vunpack.c.l.b16 %v1091
    %v1166 = vunpack.c.h.b16 %v1091
    %v1167 = vunpack.c.l.b16 %v1092
    %v1168 = vunpack.c.h.b16 %v1092
    %v1169 = vunpack.c.l.b16 %v1093
    %v1170 = vunpack.c.h.b16 %v1093
    %v1171 = vunpack.c.l.b16 %v1094
    %v1172 = vunpack.c.h.b16 %v1094
    %v1173 = vunpack.c.l.b16 %v1095
    %v1174 = vunpack.c.h.b16 %v1095
    %v1175 = vunpack.c.l.b16 %v1096
    %v1176 = vunpack.c.h.b16 %v1096
    %v1177 = vunpack.c.l.b16 %v1097
    %v1178 = vunpack.c.h.b16 %v1097
    %v1179 = vunpack.c.l.b16 %v1098
    %v1180 = vunpack.c.h.b16 %v1098
    %v1181 = vunpack.c.l.b16 %v1099
    %v1182 = vunpack.c.h.b16 %v1099
    %v1183 = vunpack.c.l.b16 %v1100
    %v1184 = vunpack.c.h.b16 %v1100
    %v1185 = vunpack.c.l.b16 %v1101
    %v1186 = vunpack.c.h.b16 %v1101
    %v1187 = vunpack.c.l.b16 %v1102
    %v1188 = vunpack.c.h.b16 %v1102
    %v1189 = vunpack.c.l.b16 %v1103
    %v1190 = vunpack.c.h.b16 %v1103
    %v1191 = vunpack.c.l.b16 %v1104
    %v1192 = vunpack.c.h.b16 %v1104
    %v1193 = vunpack.c.l.b16 %v1105
    %v1194 = vunpack.c.h.b16 %v1105
    %v1195 = vunpack.c.l.b16 %v1106
    %v1196 = vunpack.c.h.b16 %v1106
    %v1197 = vunpack.c.l.b16 %v1107
    %v1198 = vunpack.c.h.b16 %v1107
    %v1199 = vunpack.c.l.b16 %v1108
    %v1200 = vunpack.c.h.b16 %v1108
    %v1201 = vunpack.c.l.b16 %v1109
    %v1202 = vunpack.c.h.b16 %v1109
    %v1203 = vunpack.c.l.b16 %v1110
    %v1204 = vunpack.c.h.b16 %v1110
    %v1205 = vunpack.c.l.b16 %v1111
    %v1206 = vunpack.c.h.b16 %v1111
    %v1207 = vunpack.c.l.b16 %v1112
    %v1208 = vunpack.c.h.b16 %v1112
    %v1209 = vpack.c.b16 %v1149, %v1145
    %v1210 = vpack.c.b16 %v1150, %v1146
    %v1211 = vpack.c.b16 %v1151, %v1147
    %v1212 = vpack.c.b16 %v1152, %v1148
    %v1213 = vpack.c.b16 %v1157, %v1153
    %v1214 = vpack.c.b16 %v1158, %v1154
    %v1215 = vpack.c.b16 %v1159, %v1155
    %v1216 = vpack.c.b16 %v1160, %v1156
    %v1217 = vpack.c.b16 %v1165, %v1161
    %v1218 = vpack.c.b16 %v1166, %v1162
    %v1219 = vpack.c.b16 %v1167, %v1163
    %v1220 = vpack.c.b16 %v1168, %v1164
    %v1221 = vpack.c.b16 %v1173, %v1169
    %v1222 = vpack.c.b16 %v1174, %v1170
    %v1223 = vpack.c.b16 %v1175, %v1171
    %v1224 = vpack.c.b16 %v1176, %v1172
    %v1225 = vpack.c.b16 %v1181, %v1177
    %v1226 = vpack.c.b16 %v1182, %v1178
    %v1227 = vpack.c.b16 %v1183, %v1179
    %v1228 = vpack.c.b16 %v1184, %v1180
    %v1229 = vpack.c.b16 %v1189, %v1185
    %v1230 = vpack.c.b16 %v1190, %v1186
    %v1231 = vpack.c.b16 %v1191, %v1187
    %v1232 = vpack.c.b16 %v1192, %v1188
    %v1233 = vpack.c.b16 %v1197, %v1193
    %v1234 = vpack.c.b16 %v1198, %v1194
    %v1235 = vpack.c.b16 %v1199, %v1195
    %v1236 = vpack.c.b16 %v1200, %v1196
    %v1237 = vpack.c.b16 %v1205, %v1201
    %v1238 = vpack.c.b16 %v1206, %v1202
    %v1239 = vpack.c.b16 %v1207, %v1203
    %v1240 = vpack.c.b16 %v1208, %v1204
    %1273 = vmatprep.subr.bf16.mxu0 %v1238
    %1274 = vmatpush1.bf16.msra.mxu0 %v1237
    %1275 = vmatprep.subr.bf16.mxu0 %v1234
    %1276 = vmatpush1.bf16.msra.mxu0 %v1233
    %1277 = vmatprep.subr.bf16.mxu0 %v1230
    %1278 = vmatpush1.bf16.msra.mxu0 %v1229
    %1279 = vmatprep.subr.bf16.mxu0 %v1226
    %1280 = vmatpush1.bf16.msra.mxu0 %v1225
    %1281 = vmatprep.subr.bf16.mxu0 %v1222
    %1282 = vmatpush1.bf16.msra.mxu0 %v1221
    %1283 = vmatprep.subr.bf16.mxu0 %v1218
    %1284 = vmatpush1.bf16.msra.mxu0 %v1217
    %1285 = vmatprep.subr.bf16.mxu0 %v1214
    %1286 = vmatpush1.bf16.msra.mxu0 %v1213
    %1287 = vmatprep.subr.bf16.mxu0 %v1210
    %1288 = vmatpush1.bf16.msra.mxu0 %v1209
    %1289 = vmatprep.subr.bf16.mxu0 0
    %1290 = vmatpush2.bf16.msra.mxu0 0
    %1291 = vmatprep.subr.bf16.mxu0 0
    %1292 = vmatpush2.bf16.msra.mxu0 0
    %1293 = vmatprep.subr.bf16.mxu0 0
    %1294 = vmatpush2.bf16.msra.mxu0 0
    %1295 = vmatprep.subr.bf16.mxu0 0
    %1296 = vmatpush2.bf16.msra.mxu0 0
    %1297 = vmatprep.subr.bf16.mxu0 0
    %1298 = vmatpush2.bf16.msra.mxu0 0
    %1299 = vmatprep.subr.bf16.mxu0 0
    %1300 = vmatpush2.bf16.msra.mxu0 0
    %1301 = vmatprep.subr.bf16.mxu0 0
    %1302 = vmatpush2.bf16.msra.mxu0 0
    %1303 = vmatprep.subr.bf16.mxu0 0
    %1304 = vmatpush2.bf16.msra.mxu0 0
    %1305 = vmatprep.mubr.bf16.mxu0 0
    %1306 = vmatmul.mubr.bf16.gmra.mxu0 %v1080
    %v1307 = vpop.f32.mrf.mxu0
    %v1308 = vadd.f32 0.0, %v1307
    %v1309 = vpop.f32.mrf.mxu0
    %v1310 = vadd.f32 0.0, %v1309
    %v1311 = vpop.f32.mrf.mxu0
    %v1312 = vpop.f32.mrf.mxu0
    %1313 = vdwg.mxu0
    %1314 = vmatprep.subr.bf16.mxu0 %v1240
    %1315 = vmatpush1.bf16.msra.mxu0 %v1239
    %1316 = vmatprep.subr.bf16.mxu0 %v1236
    %1317 = vmatpush1.bf16.msra.mxu0 %v1235
    %1318 = vmatprep.subr.bf16.mxu0 %v1232
    %1319 = vmatpush1.bf16.msra.mxu0 %v1231
    %1320 = vmatprep.subr.bf16.mxu0 %v1228
    %1321 = vmatpush1.bf16.msra.mxu0 %v1227
    %1322 = vmatprep.subr.bf16.mxu0 %v1224
    %1323 = vmatpush1.bf16.msra.mxu0 %v1223
    %1324 = vmatprep.subr.bf16.mxu0 %v1220
    %1325 = vmatpush1.bf16.msra.mxu0 %v1219
    %1326 = vmatprep.subr.bf16.mxu0 %v1216
    %1327 = vmatpush1.bf16.msra.mxu0 %v1215
    %1328 = vmatprep.subr.bf16.mxu0 %v1212
    %1329 = vmatpush1.bf16.msra.mxu0 %v1211
    %1330 = vmatprep.subr.bf16.mxu0 0
    %1331 = vmatpush2.bf16.msra.mxu0 0
    %1332 = vmatprep.subr.bf16.mxu0 0
    %1333 = vmatpush2.bf16.msra.mxu0 0
    %1334 = vmatprep.subr.bf16.mxu0 0
    %1335 = vmatpush2.bf16.msra.mxu0 0
    %1336 = vmatprep.subr.bf16.mxu0 0
    %1337 = vmatpush2.bf16.msra.mxu0 0
    %1338 = vmatprep.subr.bf16.mxu0 0
    %1339 = vmatpush2.bf16.msra.mxu0 0
    %1340 = vmatprep.subr.bf16.mxu0 0
    %1341 = vmatpush2.bf16.msra.mxu0 0
    %1342 = vmatprep.subr.bf16.mxu0 0
    %1343 = vmatpush2.bf16.msra.mxu0 0
    %1344 = vmatprep.subr.bf16.mxu0 0
    %1345 = vmatpush2.bf16.msra.mxu0 0
    %1346 = vmatprep.mubr.bf16.mxu0 0
    %1347 = vmatmul.mubr.bf16.gmra.mxu0 %v1080
    %v1348 = vpop.f32.mrf.mxu0
    %v1349 = vadd.f32 0.0, %v1348
    %v1350 = vpop.f32.mrf.mxu0
    %v1351 = vadd.f32 0.0, %v1350
    %v1352 = vpop.f32.mrf.mxu0
    %v1353 = vpop.f32.mrf.mxu0
    %1354 = vdwg.mxu0
    %v1359 = vcombine.low %v1308, %v1310
    %v1360 = vcombine.low %v1349, %v1351
    %v1362 = vunpack.c.l.s4 1966171168
    %v1363 = vunpack.c.0.s8 %v1362
    %v1364 = vlaneseq
    %v1365 = vshrl.u32 %v1364, 7
    %v1366 = vsub.s32 %v1363, %v1365
    %v1367 = vrot.slane %v1359, %v1366
    %v1369 = vunpack.c.l.s4 1966171168
    %v1370 = vunpack.c.0.s8 %v1369
    %v1371 = vlaneseq
    %v1372 = vshrl.u32 %v1371, 7
    %v1373 = vsub.s32 %v1370, %v1372
    %v1374 = vrot.slane %v1360, %v1373
    %v1375 = vcombine.low %v1367, %v1374
    %v1377 = vunpack.c.l.s4 1966171168
    %v1378 = vunpack.c.0.s8 %v1377
    %v1379 = vlaneseq
    %v1380 = vshrl.u32 %v1379, 7
    %v1381 = vsub.s32 %v1378, %v1380
    %v1382 = vrot.slane %v1375, %v1381
    %v1384 = vadd.f32 %v1079, %v1382
    %v1385 = vsub.f32 0.0, %v1384
    %v1386 = vmul.f32 %v1385, 1.442695
    %v1387 = vpow.pop %v1386
    %v1388 = vadd.f32 %v1387, 1.0
    %v1389 = vrcp.pop %v1388
    %v1391 = vrot.slane %v1384, 1
    %v1393 = vsub.f32 0.0, %v1391
    %v1394 = vmul.f32 %v1393, 1.442695
    %v1395 = vpow.pop %v1394
    %v1396 = vadd.f32 %v1395, 1.0
    %v1397 = vrcp.pop %v1396
    %v1398 = vrot.slane %v1384, 2
    %v1400 = vtanh.pop %v1398
    %v1401 = vrot.slane %v1384, 3
    %v1403 = vsub.f32 0.0, %v1401
    %v1404 = vmul.f32 %v1403, 1.442695
    %v1405 = vpow.pop %v1404
    %v1406 = vadd.f32 %v1405, 1.0
    %v1407 = vrcp.pop %v1406
    %v1408 = vmul.f32 %v1397, %v1074
    %v1409 = vmul.f32 %v1389, %v1400
    %v1410 = vadd.f32 %v1408, %v1409
    %v1411 = vtanh.pop %v1410
    %v1412 = vmul.f32 %v1407, %v1411
    %1413 = vst [vmem:[#allocation2 + $0x3] sm:$0x1] %v1412
    %s1414 = scalar_lea.vmem [#allocation3], 4
    %v1415 = vld [vmem:[%s1414] ss:$8 sm:$0xf]
    %v1416 = vpack.c.bf16 %v1412, %v1412
    %v1417 = vld [vmem:[#allocation6] sm:$0xff]
    %v1418 = vld [vmem:[#allocation6 + $0x8] sm:$0xff]
    %v1419 = vld [vmem:[#allocation6 + $0x10] sm:$0xff]
    %v1420 = vld [vmem:[#allocation6 + $0x18] sm:$0xff]
    %v1421 = vld [vmem:[#allocation6 + $0x20] sm:$0xff]
    %v1422 = vld [vmem:[#allocation6 + $0x28] sm:$0xff]
    %v1423 = vld [vmem:[#allocation6 + $0x30] sm:$0xff]
    %v1424 = vld [vmem:[#allocation6 + $0x38] sm:$0xff]
    %v1425 = vld [vmem:[#allocation6 + $0x40] sm:$0xff]
    %v1426 = vld [vmem:[#allocation6 + $0x48] sm:$0xff]
    %v1427 = vld [vmem:[#allocation6 + $0x50] sm:$0xff]
    %v1428 = vld [vmem:[#allocation6 + $0x58] sm:$0xff]
    %v1429 = vld [vmem:[#allocation6 + $0x60] sm:$0xff]
    %v1430 = vld [vmem:[#allocation6 + $0x68] sm:$0xff]
    %v1431 = vld [vmem:[#allocation6 + $0x70] sm:$0xff]
    %v1432 = vld [vmem:[#allocation6 + $0x78] sm:$0xff]
    %v1433 = vld [vmem:[#allocation6 + $0x80] sm:$0xff]
    %v1434 = vld [vmem:[#allocation6 + $0x88] sm:$0xff]
    %v1435 = vld [vmem:[#allocation6 + $0x90] sm:$0xff]
    %v1436 = vld [vmem:[#allocation6 + $0x98] sm:$0xff]
    %v1437 = vld [vmem:[#allocation6 + $0xa0] sm:$0xff]
    %v1438 = vld [vmem:[#allocation6 + $0xa8] sm:$0xff]
    %v1439 = vld [vmem:[#allocation6 + $0xb0] sm:$0xff]
    %v1440 = vld [vmem:[#allocation6 + $0xb8] sm:$0xff]
    %v1441 = vld [vmem:[#allocation6 + $0xc0] sm:$0xff]
    %v1442 = vld [vmem:[#allocation6 + $0xc8] sm:$0xff]
    %v1443 = vld [vmem:[#allocation6 + $0xd0] sm:$0xff]
    %v1444 = vld [vmem:[#allocation6 + $0xd8] sm:$0xff]
    %v1445 = vld [vmem:[#allocation6 + $0xe0] sm:$0xff]
    %v1446 = vld [vmem:[#allocation6 + $0xe8] sm:$0xff]
    %v1447 = vld [vmem:[#allocation6 + $0xf0] sm:$0xff]
    %v1448 = vld [vmem:[#allocation6 + $0xf8] sm:$0xff]
    %v1481 = vunpack.c.l.b16 %v1417
    %v1482 = vunpack.c.h.b16 %v1417
    %v1483 = vunpack.c.l.b16 %v1418
    %v1484 = vunpack.c.h.b16 %v1418
    %v1485 = vunpack.c.l.b16 %v1419
    %v1486 = vunpack.c.h.b16 %v1419
    %v1487 = vunpack.c.l.b16 %v1420
    %v1488 = vunpack.c.h.b16 %v1420
    %v1489 = vunpack.c.l.b16 %v1421
    %v1490 = vunpack.c.h.b16 %v1421
    %v1491 = vunpack.c.l.b16 %v1422
    %v1492 = vunpack.c.h.b16 %v1422
    %v1493 = vunpack.c.l.b16 %v1423
    %v1494 = vunpack.c.h.b16 %v1423
    %v1495 = vunpack.c.l.b16 %v1424
    %v1496 = vunpack.c.h.b16 %v1424
    %v1497 = vunpack.c.l.b16 %v1425
    %v1498 = vunpack.c.h.b16 %v1425
    %v1499 = vunpack.c.l.b16 %v1426
    %v1500 = vunpack.c.h.b16 %v1426
    %v1501 = vunpack.c.l.b16 %v1427
    %v1502 = vunpack.c.h.b16 %v1427
    %v1503 = vunpack.c.l.b16 %v1428
    %v1504 = vunpack.c.h.b16 %v1428
    %v1505 = vunpack.c.l.b16 %v1429
    %v1506 = vunpack.c.h.b16 %v1429
    %v1507 = vunpack.c.l.b16 %v1430
    %v1508 = vunpack.c.h.b16 %v1430
    %v1509 = vunpack.c.l.b16 %v1431
    %v1510 = vunpack.c.h.b16 %v1431
    %v1511 = vunpack.c.l.b16 %v1432
    %v1512 = vunpack.c.h.b16 %v1432
    %v1513 = vunpack.c.l.b16 %v1433
    %v1514 = vunpack.c.h.b16 %v1433
    %v1515 = vunpack.c.l.b16 %v1434
    %v1516 = vunpack.c.h.b16 %v1434
    %v1517 = vunpack.c.l.b16 %v1435
    %v1518 = vunpack.c.h.b16 %v1435
    %v1519 = vunpack.c.l.b16 %v1436
    %v1520 = vunpack.c.h.b16 %v1436
    %v1521 = vunpack.c.l.b16 %v1437
    %v1522 = vunpack.c.h.b16 %v1437
    %v1523 = vunpack.c.l.b16 %v1438
    %v1524 = vunpack.c.h.b16 %v1438
    %v1525 = vunpack.c.l.b16 %v1439
    %v1526 = vunpack.c.h.b16 %v1439
    %v1527 = vunpack.c.l.b16 %v1440
    %v1528 = vunpack.c.h.b16 %v1440
    %v1529 = vunpack.c.l.b16 %v1441
    %v1530 = vunpack.c.h.b16 %v1441
    %v1531 = vunpack.c.l.b16 %v1442
    %v1532 = vunpack.c.h.b16 %v1442
    %v1533 = vunpack.c.l.b16 %v1443
    %v1534 = vunpack.c.h.b16 %v1443
    %v1535 = vunpack.c.l.b16 %v1444
    %v1536 = vunpack.c.h.b16 %v1444
    %v1537 = vunpack.c.l.b16 %v1445
    %v1538 = vunpack.c.h.b16 %v1445
    %v1539 = vunpack.c.l.b16 %v1446
    %v1540 = vunpack.c.h.b16 %v1446
    %v1541 = vunpack.c.l.b16 %v1447
    %v1542 = vunpack.c.h.b16 %v1447
    %v1543 = vunpack.c.l.b16 %v1448
    %v1544 = vunpack.c.h.b16 %v1448
    %v1545 = vpack.c.b16 %v1485, %v1481
    %v1546 = vpack.c.b16 %v1486, %v1482
    %v1547 = vpack.c.b16 %v1487, %v1483
    %v1548 = vpack.c.b16 %v1488, %v1484
    %v1549 = vpack.c.b16 %v1493, %v1489
    %v1550 = vpack.c.b16 %v1494, %v1490
    %v1551 = vpack.c.b16 %v1495, %v1491
    %v1552 = vpack.c.b16 %v1496, %v1492
    %v1553 = vpack.c.b16 %v1501, %v1497
    %v1554 = vpack.c.b16 %v1502, %v1498
    %v1555 = vpack.c.b16 %v1503, %v1499
    %v1556 = vpack.c.b16 %v1504, %v1500
    %v1557 = vpack.c.b16 %v1509, %v1505
    %v1558 = vpack.c.b16 %v1510, %v1506
    %v1559 = vpack.c.b16 %v1511, %v1507
    %v1560 = vpack.c.b16 %v1512, %v1508
    %v1561 = vpack.c.b16 %v1517, %v1513
    %v1562 = vpack.c.b16 %v1518, %v1514
    %v1563 = vpack.c.b16 %v1519, %v1515
    %v1564 = vpack.c.b16 %v1520, %v1516
    %v1565 = vpack.c.b16 %v1525, %v1521
    %v1566 = vpack.c.b16 %v1526, %v1522
    %v1567 = vpack.c.b16 %v1527, %v1523
    %v1568 = vpack.c.b16 %v1528, %v1524
    %v1569 = vpack.c.b16 %v1533, %v1529
    %v1570 = vpack.c.b16 %v1534, %v1530
    %v1571 = vpack.c.b16 %v1535, %v1531
    %v1572 = vpack.c.b16 %v1536, %v1532
    %v1573 = vpack.c.b16 %v1541, %v1537
    %v1574 = vpack.c.b16 %v1542, %v1538
    %v1575 = vpack.c.b16 %v1543, %v1539
    %v1576 = vpack.c.b16 %v1544, %v1540
    %1609 = vmatprep.subr.bf16.mxu0 %v1574
    %1610 = vmatpush1.bf16.msra.mxu0 %v1573
    %1611 = vmatprep.subr.bf16.mxu0 %v1570
    %1612 = vmatpush1.bf16.msra.mxu0 %v1569
    %1613 = vmatprep.subr.bf16.mxu0 %v1566
    %1614 = vmatpush1.bf16.msra.mxu0 %v1565
    %1615 = vmatprep.subr.bf16.mxu0 %v1562
    %1616 = vmatpush1.bf16.msra.mxu0 %v1561
    %1617 = vmatprep.subr.bf16.mxu0 %v1558
    %1618 = vmatpush1.bf16.msra.mxu0 %v1557
    %1619 = vmatprep.subr.bf16.mxu0 %v1554
    %1620 = vmatpush1.bf16.msra.mxu0 %v1553
    %1621 = vmatprep.subr.bf16.mxu0 %v1550
    %1622 = vmatpush1.bf16.msra.mxu0 %v1549
    %1623 = vmatprep.subr.bf16.mxu0 %v1546
    %1624 = vmatpush1.bf16.msra.mxu0 %v1545
    %1625 = vmatprep.subr.bf16.mxu0 0
    %1626 = vmatpush2.bf16.msra.mxu0 0
    %1627 = vmatprep.subr.bf16.mxu0 0
    %1628 = vmatpush2.bf16.msra.mxu0 0
    %1629 = vmatprep.subr.bf16.mxu0 0
    %1630 = vmatpush2.bf16.msra.mxu0 0
    %1631 = vmatprep.subr.bf16.mxu0 0
    %1632 = vmatpush2.bf16.msra.mxu0 0
    %1633 = vmatprep.subr.bf16.mxu0 0
    %1634 = vmatpush2.bf16.msra.mxu0 0
    %1635 = vmatprep.subr.bf16.mxu0 0
    %1636 = vmatpush2.bf16.msra.mxu0 0
    %1637 = vmatprep.subr.bf16.mxu0 0
    %1638 = vmatpush2.bf16.msra.mxu0 0
    %1639 = vmatprep.subr.bf16.mxu0 0
    %1640 = vmatpush2.bf16.msra.mxu0 0
    %1641 = vmatprep.mubr.bf16.mxu0 0
    %1642 = vmatmul.mubr.bf16.gmra.mxu0 %v1416
    %v1643 = vpop.f32.mrf.mxu0
    %v1644 = vadd.f32 0.0, %v1643
    %v1645 = vpop.f32.mrf.mxu0
    %v1646 = vadd.f32 0.0, %v1645
    %v1647 = vpop.f32.mrf.mxu0
    %v1648 = vpop.f32.mrf.mxu0
    %1649 = vdwg.mxu0
    %1650 = vmatprep.subr.bf16.mxu0 %v1576
    %1651 = vmatpush1.bf16.msra.mxu0 %v1575
    %1652 = vmatprep.subr.bf16.mxu0 %v1572
    %1653 = vmatpush1.bf16.msra.mxu0 %v1571
    %1654 = vmatprep.subr.bf16.mxu0 %v1568
    %1655 = vmatpush1.bf16.msra.mxu0 %v1567
    %1656 = vmatprep.subr.bf16.mxu0 %v1564
    %1657 = vmatpush1.bf16.msra.mxu0 %v1563
    %1658 = vmatprep.subr.bf16.mxu0 %v1560
    %1659 = vmatpush1.bf16.msra.mxu0 %v1559
    %1660 = vmatprep.subr.bf16.mxu0 %v1556
    %1661 = vmatpush1.bf16.msra.mxu0 %v1555
    %1662 = vmatprep.subr.bf16.mxu0 %v1552
    %1663 = vmatpush1.bf16.msra.mxu0 %v1551
    %1664 = vmatprep.subr.bf16.mxu0 %v1548
    %1665 = vmatpush1.bf16.msra.mxu0 %v1547
    %1666 = vmatprep.subr.bf16.mxu0 0
    %1667 = vmatpush2.bf16.msra.mxu0 0
    %1668 = vmatprep.subr.bf16.mxu0 0
    %1669 = vmatpush2.bf16.msra.mxu0 0
    %1670 = vmatprep.subr.bf16.mxu0 0
    %1671 = vmatpush2.bf16.msra.mxu0 0
    %1672 = vmatprep.subr.bf16.mxu0 0
    %1673 = vmatpush2.bf16.msra.mxu0 0
    %1674 = vmatprep.subr.bf16.mxu0 0
    %1675 = vmatpush2.bf16.msra.mxu0 0
    %1676 = vmatprep.subr.bf16.mxu0 0
    %1677 = vmatpush2.bf16.msra.mxu0 0
    %1678 = vmatprep.subr.bf16.mxu0 0
    %1679 = vmatpush2.bf16.msra.mxu0 0
    %1680 = vmatprep.subr.bf16.mxu0 0
    %1681 = vmatpush2.bf16.msra.mxu0 0
    %1682 = vmatprep.mubr.bf16.mxu0 0
    %1683 = vmatmul.mubr.bf16.gmra.mxu0 %v1416
    %v1684 = vpop.f32.mrf.mxu0
    %v1685 = vadd.f32 0.0, %v1684
    %v1686 = vpop.f32.mrf.mxu0
    %v1687 = vadd.f32 0.0, %v1686
    %v1688 = vpop.f32.mrf.mxu0
    %v1689 = vpop.f32.mrf.mxu0
    %1690 = vdwg.mxu0
    %v1695 = vcombine.low %v1644, %v1646
    %v1696 = vcombine.low %v1685, %v1687
    %v1698 = vunpack.c.l.s4 1966171168
    %v1699 = vunpack.c.0.s8 %v1698
    %v1700 = vlaneseq
    %v1701 = vshrl.u32 %v1700, 7
    %v1702 = vsub.s32 %v1699, %v1701
    %v1703 = vrot.slane %v1695, %v1702
    %v1705 = vunpack.c.l.s4 1966171168
    %v1706 = vunpack.c.0.s8 %v1705
    %v1707 = vlaneseq
    %v1708 = vshrl.u32 %v1707, 7
    %v1709 = vsub.s32 %v1706, %v1708
    %v1710 = vrot.slane %v1696, %v1709
    %v1711 = vcombine.low %v1703, %v1710
    %v1713 = vunpack.c.l.s4 1966171168
    %v1714 = vunpack.c.0.s8 %v1713
    %v1715 = vlaneseq
    %v1716 = vshrl.u32 %v1715, 7
    %v1717 = vsub.s32 %v1714, %v1716
    %v1718 = vrot.slane %v1711, %v1717
    %v1720 = vadd.f32 %v1415, %v1718
    %v1721 = vsub.f32 0.0, %v1720
    %v1722 = vmul.f32 %v1721, 1.442695
    %v1723 = vpow.pop %v1722
    %v1724 = vadd.f32 %v1723, 1.0
    %v1725 = vrcp.pop %v1724
    %v1727 = vrot.slane %v1720, 1
    %v1729 = vsub.f32 0.0, %v1727
    %v1730 = vmul.f32 %v1729, 1.442695
    %v1731 = vpow.pop %v1730
    %v1732 = vadd.f32 %v1731, 1.0
    %v1733 = vrcp.pop %v1732
    %v1734 = vrot.slane %v1720, 2
    %v1736 = vtanh.pop %v1734
    %v1737 = vrot.slane %v1720, 3
    %v1739 = vsub.f32 0.0, %v1737
    %v1740 = vmul.f32 %v1739, 1.442695
    %v1741 = vpow.pop %v1740
    %v1742 = vadd.f32 %v1741, 1.0
    %v1743 = vrcp.pop %v1742
    %v1744 = vmul.f32 %v1733, %v1410
    %v1745 = vmul.f32 %v1725, %v1736
    %v1746 = vadd.f32 %v1744, %v1745
    %v1747 = vtanh.pop %v1746
    %v1748 = vmul.f32 %v1743, %v1747
    %1749 = vst [vmem:[#allocation2 + $0x4] sm:$0x1] %v1748
    %1750 = vst [vmem:[#allocation10] sm:$0x1] %v1748
    %1751 = vst [vmem:[#allocation12] sm:$0x1] %v1746
    %v1752 = vld [vmem:[#allocation2] sm:$0xff]
    %v1753 = vpack.c.bf16 %v1752, %v1752
    %v1754 = vld [vmem:[#allocation8] sm:$0xf]
    %v1755 = vld [vmem:[#allocation8 + $0x4] sm:$0xf]
    %v1756 = vld [vmem:[#allocation8 + $0x8] sm:$0xf]
    %v1757 = vld [vmem:[#allocation8 + $0xc] sm:$0xf]
    %v1758 = vld [vmem:[#allocation8 + $0x10] sm:$0xf]
    %v1759 = vld [vmem:[#allocation8 + $0x14] sm:$0xf]
    %v1760 = vld [vmem:[#allocation8 + $0x18] sm:$0xf]
    %v1761 = vld [vmem:[#allocation8 + $0x1c] sm:$0xf]
    %v1762 = vld [vmem:[#allocation8 + $0x20] sm:$0xf]
    %v1763 = vld [vmem:[#allocation8 + $0x24] sm:$0xf]
    %v1764 = vld [vmem:[#allocation8 + $0x28] sm:$0xf]
    %v1765 = vld [vmem:[#allocation8 + $0x2c] sm:$0xf]
    %v1766 = vld [vmem:[#allocation8 + $0x30] sm:$0xf]
    %v1767 = vld [vmem:[#allocation8 + $0x34] sm:$0xf]
    %v1768 = vld [vmem:[#allocation8 + $0x38] sm:$0xf]
    %v1769 = vld [vmem:[#allocation8 + $0x3c] sm:$0xf]
    %v1770 = vld [vmem:[%s5] sm:$0x1]
    %v1772 = vlaneseq
    %v1773 = vshrl.u32 %v1772, 7
    %v1774 = vsub.s32 0, %v1773
    %v1775 = vrot.slane %v1770, %v1774
    %v1793 = vunpack.c.l.b16 %v1754
    %v1794 = vunpack.c.l.b16 %v1755
    %v1795 = vunpack.c.l.b16 %v1756
    %v1796 = vunpack.c.l.b16 %v1757
    %v1797 = vunpack.c.l.b16 %v1758
    %v1798 = vunpack.c.l.b16 %v1759
    %v1799 = vunpack.c.l.b16 %v1760
    %v1800 = vunpack.c.l.b16 %v1761
    %v1801 = vunpack.c.l.b16 %v1762
    %v1802 = vunpack.c.l.b16 %v1763
    %v1803 = vunpack.c.l.b16 %v1764
    %v1804 = vunpack.c.l.b16 %v1765
    %v1805 = vunpack.c.l.b16 %v1766
    %v1806 = vunpack.c.l.b16 %v1767
    %v1807 = vunpack.c.l.b16 %v1768
    %v1808 = vunpack.c.l.b16 %v1769
    %v1809 = vpack.c.b16 %v1794, %v1793
    %v1810 = vpack.c.b16 %v1796, %v1795
    %v1811 = vpack.c.b16 %v1798, %v1797
    %v1812 = vpack.c.b16 %v1800, %v1799
    %v1813 = vpack.c.b16 %v1802, %v1801
    %v1814 = vpack.c.b16 %v1804, %v1803
    %v1815 = vpack.c.b16 %v1806, %v1805
    %v1816 = vpack.c.b16 %v1808, %v1807
    %1825 = vmatprep.subr.bf16.mxu0 0
    %1826 = vmatpush1.bf16.msra.mxu0 %v1816
    %1827 = vmatprep.subr.bf16.mxu0 0
    %1828 = vmatpush1.bf16.msra.mxu0 %v1815
    %1829 = vmatprep.subr.bf16.mxu0 0
    %1830 = vmatpush1.bf16.msra.mxu0 %v1814
    %1831 = vmatprep.subr.bf16.mxu0 0
    %1832 = vmatpush1.bf16.msra.mxu0 %v1813
    %1833 = vmatprep.subr.bf16.mxu0 0
    %1834 = vmatpush1.bf16.msra.mxu0 %v1812
    %1835 = vmatprep.subr.bf16.mxu0 0
    %1836 = vmatpush1.bf16.msra.mxu0 %v1811
    %1837 = vmatprep.subr.bf16.mxu0 0
    %1838 = vmatpush1.bf16.msra.mxu0 %v1810
    %1839 = vmatprep.subr.bf16.mxu0 0
    %1840 = vmatpush1.bf16.msra.mxu0 %v1809
    %1841 = vmatprep.subr.bf16.mxu0 0
    %1842 = vmatpush2.bf16.msra.mxu0 0
    %1843 = vmatprep.subr.bf16.mxu0 0
    %1844 = vmatpush2.bf16.msra.mxu0 0
    %1845 = vmatprep.subr.bf16.mxu0 0
    %1846 = vmatpush2.bf16.msra.mxu0 0
    %1847 = vmatprep.subr.bf16.mxu0 0
    %1848 = vmatpush2.bf16.msra.mxu0 0
    %1849 = vmatprep.subr.bf16.mxu0 0
    %1850 = vmatpush2.bf16.msra.mxu0 0
    %1851 = vmatprep.subr.bf16.mxu0 0
    %1852 = vmatpush2.bf16.msra.mxu0 0
    %1853 = vmatprep.subr.bf16.mxu0 0
    %1854 = vmatpush2.bf16.msra.mxu0 0
    %1855 = vmatprep.subr.bf16.mxu0 0
    %1856 = vmatpush2.bf16.msra.mxu0 0
    %1857 = vmatprep.mubr.bf16.mxu0 0
    %1858 = vmatmul.mubr.bf16.gmra.mxu0 %v1753
    %v1859 = vpop.f32.mrf.mxu0
    %v1860 = vadd.f32 %v1775, %v1859
    %v1861 = vpop.f32.mrf.mxu0
    %v1862 = vpop.f32.mrf.mxu0
    %v1863 = vpop.f32.mrf.mxu0
    %1864 = vdwg.mxu0
    %1865 = vmax.xlane.f32.xlu0 %v1860
    %v1866 = vpop.xlane.xlu0 %1865
    %v1867 = vsub.f32 %v1860, %v1866
    %v1868 = vmul.f32 %v1867, 1.442695
    %v1869 = vpow.pop %v1868
    %1870 = vadd.xlane.f32.xlu0 %v1869
    %v1871 = vpop.xlane.xlu0 %1870
    %v1872 = vlog2.pop %v1871
    %v1873 = vmul.f32 %v1872, 0.6931472
    %v1874 = vadd.f32 %v1866, %v1873
    %v1875 = vsub.f32 %v1860, %v1874
    %1876 = vst [vmem:[#allocation9] sm:$0xff] %v1875
    // Predicated region
    $region38: #{tpu_custom_call.1} parent=1 // pred_check
      _
    $region39: #{tpu_custom_call.1} parent=1 // pred_check_branch
      %1878 = sbr.rel (0) target = $region41
    $region40: #{tpu_custom_call.1} parent=1 // pred_region
      %s1880 = ssub.s32 128, 128
      %1881 = vsyncadd [#allocation5], %s1880
      %s1883 = sshll.u32 [#allocation9], 4
      %s1884 = int_to_ptr.vmem [resolvable:$true] %s1883
      %1886 = dma.vmem_to_hbm [thread:$0]  %s1884, 128, %s6, [#allocation5]
    $region41: #{tpu_custom_call.1} parent=1 // pred_fallthru
      _
    // Predicated region
    $region42: #{tpu_custom_call.1} parent=1 // pred_check
      _
    $region43: #{tpu_custom_call.1} parent=1 // pred_check_branch
      %1888 = sbr.rel (0) target = $region45
    $region44: #{tpu_custom_call.1} parent=1 // pred_region
      %s1890 = ssub.s32 16, 16
      %1891 = vsyncadd [#allocation11], %s1890
      %s1893 = sshll.u32 [#allocation10], 4
      %s1894 = int_to_ptr.vmem [resolvable:$true] %s1893
      %1896 = dma.vmem_to_hbm [thread:$0]  %s1894, 16, %s7, [#allocation11]
    $region45: #{tpu_custom_call.1} parent=1 // pred_fallthru
      _
    // Predicated region
    $region46: #{tpu_custom_call.1} parent=1 // pred_check
      _
    $region47: #{tpu_custom_call.1} parent=1 // pred_check_branch
      %1898 = sbr.rel (0) target = $region49
    $region48: #{tpu_custom_call.1} parent=1 // pred_region
      %s1900 = ssub.s32 16, 16
      %1901 = vsyncadd [#allocation11], %s1900
      %s1903 = sshll.u32 [#allocation12], 4
      %s1904 = int_to_ptr.vmem [resolvable:$true] %s1903
      %1906 = dma.vmem_to_hbm [thread:$0]  %s1904, 16, %s8, [#allocation11]
    $region49: #{tpu_custom_call.1} parent=1 // pred_fallthru
      _
    // Predicated region
    $region50: #{tpu_custom_call.1} parent=1 // pred_check
      _
    $region51: #{tpu_custom_call.1} parent=1 // pred_check_branch
      %1908 = sbr.rel (0) target = $region53
    $region52: #{tpu_custom_call.1} parent=1 // pred_region
      %1909 = dma.done [#allocation5], 128
    $region53: #{tpu_custom_call.1} parent=1 // pred_fallthru
      _
    // Predicated region
    $region54: #{tpu_custom_call.1} parent=1 // pred_check
      _
    $region55: #{tpu_custom_call.1} parent=1 // pred_check_branch
      %1911 = sbr.rel (0) target = $region57
    $region56: #{tpu_custom_call.1} parent=1 // pred_region
      %1912 = dma.done [#allocation11], 16
    $region57: #{tpu_custom_call.1} parent=1 // pred_fallthru
      _
    // Predicated region
    $region58: #{tpu_custom_call.1} parent=1 // pred_check
      _
    $region59: #{tpu_custom_call.1} parent=1 // pred_check_branch
      %1914 = sbr.rel (0) target = $region61
    $region60: #{tpu_custom_call.1} parent=1 // pred_region
      %1915 = dma.done [#allocation11], 16
    $region61: #{tpu_custom_call.1} parent=1 // pred_fallthru
      _
    %1916 = vsyncpa [#allocation4], 1
    %1917 = vsyncpa [#allocation7], 1
    %1918 = vsyncpa [#allocation5], 1
    %1919 = vsyncpa [#allocation11], 1

</llo_original>
